<compile_context>
chip_gen: v5e
topology: v5e:2x2
jax: 0.10.0
libtpu: 0.0.40
codegen_flags: <defaults>
</compile_context>

<pallas_src>
import jax
import jax.numpy as jnp
from jax import lax
from jax.experimental import pallas as pl
from jax.experimental.pallas import tpu as pltpu

# ---- synthetic "gpt2" config (small but structurally faithful) --------------
D = 32            # hidden dim  (n_embd)
H = 4             # attention heads (n_head)
HD = D // H       # head dim
MLP = 4 * D       # mlp inner dim
N_LAYERS = 2      # gpt_layers (kept small for fast compile)
LORA_R = 16
LORA_ALPHA = 32
LN_EPS = 1e-5
N_POS = 64        # positional-embedding table size
MASK_VALUE = -1e9                 # saturated mask (not -inf / finfo.min)
SCALE = 1.0 / float(HD) ** 0.5

BTILE = 2         # batch elements per grid step (keep B // BTILE >= 2 for v7x)

# MXU operand dtype (all of v5e/v6e/v7x are bf16-native on the MXU);
# elementwise / softmax / LayerNorm math stays f32.
MATMUL_DTYPE = jnp.bfloat16
WEIGHT_DTYPE = jnp.bfloat16       # HBM storage dtype for weight matrices


def _mm(a, b):
    return jnp.dot(a.astype(MATMUL_DTYPE), b.astype(MATMUL_DTYPE),
                   preferred_element_type=jnp.float32)


def _layernorm(x, g, b):
    mu = jnp.mean(x, axis=-1, keepdims=True)
    var = jnp.mean(jnp.square(x - mu), axis=-1, keepdims=True)
    return (x - mu) * lax.rsqrt(var + LN_EPS) * g + b


def _gelu_new(x):
    # GPT-2 "gelu_new" (tanh approximation)
    return 0.5 * x * (1.0 + jnp.tanh(jnp.sqrt(2.0 / jnp.pi) * (x + 0.044715 * x * x * x)))


# ---------------------------------------------------------------------------
# Fused kernel: grid = (batch_block, layer).  One batch block per outer
# ("parallel") step; the inner ("arbitrary") layer axis carries the residual
# stream in VMEM scratch.
# ---------------------------------------------------------------------------
def pfa_fused_kernel(x_ref, wpe_ref, mask_ref, hsel_ref,
                     ln1g_ref, ln1b_ref, wqkv_ref, bqkv_ref, la_ref, lb_ref,
                     wap_ref, bap_ref, ln2g_ref, ln2b_ref,
                     wfc_ref, bfc_ref, wmp_ref, bmp_ref,
                     lnfg_ref, lnfb_ref,
                     out_ref, h_scratch):
    l = pl.program_id(1)
    bt, s, d = x_ref.shape
    m = bt * s

    # layer 0: hidden = inputs_embeds + position_embeds (fused; stays in VMEM)
    @pl.when(l == 0)
    def _():
        h_scratch[...] = (x_ref[...] + wpe_ref[...][None]).reshape(m, d)

    x = h_scratch[...]                    # (Btile*S, D) residual stream (f32)
    mask_add = mask_ref[...]              # (H*S, S) hoisted causal+adjacency
    head_sel = hsel_ref[...]              # (H, S, D) hoisted 0/1 head selector

    # --- attention ---
    hn = _layernorm(x, ln1g_ref[...], ln1b_ref[...])
    qkv = _mm(hn, wqkv_ref[...]) + bqkv_ref[...]
    # LoRA on c_attn (lora_dropout = 0.0; alpha/r scale pre-folded into lora_b)
    qkv = qkv + _mm(_mm(hn, la_ref[...]), lb_ref[...])

    q = qkv[:, 0 * d:1 * d] * SCALE       # 1/sqrt(HD) folded into q
    k = qkv[:, 1 * d:2 * d]
    v = qkv[:, 2 * d:3 * d]

    q3 = q.reshape(bt, s, d)              # leading-dim reshapes only (layout no-op)
    k3 = k.reshape(bt, s, d)
    v3 = v.reshape(bt, s, d)

    # Block-diagonal head trick: zero Q outside each head's HD-column block and
    # contract over the full D — one batched matmul yields all per-head scores
    # with M = H*S rows and K = D depth (no per-head slicing/stack/concat).
    q_exp = (q3[:, None, :, :] * head_sel[None]).reshape(bt, H * s, d)

    scores = jnp.einsum('bmd,bkd->bmk',
                        q_exp.astype(MATMUL_DTYPE), k3.astype(MATMUL_DTYPE),
                        preferred_element_type=jnp.float32)      # (Btile, H*S, S)
    scores = scores + mask_add[None]
    scores = scores - jnp.max(scores, axis=-1, keepdims=True)
    p = jnp.exp(scores)
    p = p * pl.reciprocal(jnp.sum(p, axis=-1, keepdims=True), approx=True)

    ctx_exp = jnp.einsum('bmk,bkd->bmd',
                         p.astype(MATMUL_DTYPE), v3.astype(MATMUL_DTYPE),
                         preferred_element_type=jnp.float32)     # (Btile, H*S, D)
    # Collapse heads: keep each head's own HD-column block and sum over h.
    ctx = (ctx_exp.reshape(bt, H, s, d) * head_sel[None]).sum(axis=1)   # (Btile,S,D)
    ctx = ctx.reshape(m, d)

    x = x + _mm(ctx, wap_ref[...]) + bap_ref[...]

    # --- MLP ---
    h2 = _layernorm(x, ln2g_ref[...], ln2b_ref[...])
    ff = _gelu_new(_mm(h2, wfc_ref[...]) + bfc_ref[...])
    x = x + _mm(ff, wmp_ref[...]) + bmp_ref[...]

    h_scratch[...] = x                    # carry residual to next layer

    # Final layer: ln_f, single store of the finished block to HBM.
    @pl.when(l == pl.num_programs(1) - 1)
    def _():
        out_ref[...] = _layernorm(x, lnfg_ref[...], lnfb_ref[...]).reshape(bt, s, d)


# ---------------------------------------------------------------------------
# Wrapper
# ---------------------------------------------------------------------------
@jax.jit
def pfa_forward(x, adjacency, params):
    """x: [B, S, D] input embeddings; adjacency: [S, S] 0/1 float matrix."""
    B, S, Dm = x.shape
    L = params["w_qkv"].shape[0]
    BT = BTILE if B % BTILE == 0 else 1
    wpe_s = params["wpe"][:S]

    # Hoisted, batch/layer-invariant additive mask: +adjacency where causal,
    # -1e9 elsewhere, pre-tiled over heads (row index = h*S + q).
    causal = jnp.tril(jnp.ones((S, S), dtype=bool))
    mask_add = jnp.where(causal, adjacency.astype(jnp.float32),
                         jnp.float32(MASK_VALUE))
    mask_tiled = jnp.tile(mask_add, (H, 1))                       # (H*S, S)

    # Hoisted 0/1 selector of each head's HD-wide column block.
    head_of_col = jnp.arange(Dm, dtype=jnp.int32) // HD
    head_sel = (head_of_col[None, :] ==
                jnp.arange(H, dtype=jnp.int32)[:, None]).astype(jnp.float32)
    head_sel = jnp.broadcast_to(head_sel[:, None, :], (H, S, Dm))  # (H, S, D)

    layer_args = (params["ln1_g"], params["ln1_b"], params["w_qkv"],
                  params["b_qkv"], params["lora_a"], params["lora_b"],
                  params["w_attn_proj"], params["b_attn_proj"],
                  params["ln2_g"], params["ln2_b"], params["w_fc"],
                  params["b_fc"], params["w_mlp_proj"], params["b_mlp_proj"])

    def layer_spec(a):     # stacked [L, ...] weight; squeezed layer dim -> 2-D ref
        return pl.BlockSpec((None,) + a.shape[1:],
                            lambda b, l: (l,) + (0,) * (a.ndim - 1))

    def const_spec(a):     # layer/batch-invariant whole-array block (stays resident)
        return pl.BlockSpec(a.shape, lambda b, l: (0,) * a.ndim)

    in_specs = ([pl.BlockSpec((BT, S, Dm), lambda b, l: (b, 0, 0)),
                 const_spec(wpe_s), const_spec(mask_tiled), const_spec(head_sel)]
                + [layer_spec(a) for a in layer_args]
                + [const_spec(params["lnf_g"]), const_spec(params["lnf_b"])])

    return pl.pallas_call(
        pfa_fused_kernel,
        out_shape=jax.ShapeDtypeStruct((B, S, Dm), jnp.float32),
        grid=(B // BT, L),
        in_specs=in_specs,
        out_specs=pl.BlockSpec((BT, S, Dm), lambda b, l: (b, 0, 0)),
        scratch_shapes=[pltpu.VMEM((BT * S, Dm), jnp.float32)],
        compiler_params=pltpu.CompilerParams(
            dimension_semantics=("parallel", "arbitrary"),
            vmem_limit_bytes=48 * 1024 * 1024),
    )(x, wpe_s, mask_tiled, head_sel, *layer_args,
      params["lnf_g"], params["lnf_b"])


# ---------------------------------------------------------------------------
# Pure-JAX reference (standard per-head attention, same bf16 matmul operands)
# ---------------------------------------------------------------------------
def pfa_forward_ref(x, adjacency, params):
    B, S, _ = x.shape
    L = params["w_qkv"].shape[0]
    h = x + params["wpe"][:S][None]
    causal = jnp.tril(jnp.ones((S, S), bool))
    mask_add = jnp.where(causal, adjacency.astype(jnp.float32),
                         jnp.float32(MASK_VALUE))
    for l in range(L):
        hn = _layernorm(h, params["ln1_g"][l], params["ln1_b"][l])
        qkv = _mm(hn, params["w_qkv"][l]) + params["b_qkv"][l]
        qkv = qkv + _mm(_mm(hn, params["lora_a"][l]), params["lora_b"][l])
        q = (qkv[..., 0 * D:1 * D] * SCALE).reshape(B, S, H, HD).transpose(0, 2, 1, 3)
        k = qkv[..., 1 * D:2 * D].reshape(B, S, H, HD).transpose(0, 2, 1, 3)
        v = qkv[..., 2 * D:3 * D].reshape(B, S, H, HD).transpose(0, 2, 1, 3)
        s = jnp.einsum('bhqd,bhkd->bhqk',
                       q.astype(MATMUL_DTYPE), k.astype(MATMUL_DTYPE),
                       preferred_element_type=jnp.float32) + mask_add
        p = jax.nn.softmax(s, axis=-1)
        ctx = jnp.einsum('bhqk,bhkd->bhqd',
                         p.astype(MATMUL_DTYPE), v.astype(MATMUL_DTYPE),
                         preferred_element_type=jnp.float32)
        ctx = ctx.transpose(0, 2, 1, 3).reshape(B, S, D)
        h = h + _mm(ctx, params["w_attn_proj"][l]) + params["b_attn_proj"][l]
        h2 = _layernorm(h, params["ln2_g"][l], params["ln2_b"][l])
        ff = _gelu_new(_mm(h2, params["w_fc"][l]) + params["b_fc"][l])
        h = h + _mm(ff, params["w_mlp_proj"][l]) + params["b_mlp_proj"][l]
    return _layernorm(h, params["lnf_g"], params["lnf_b"])


# ---------------------------------------------------------------------------
# Deterministic synthetic parameter init (stands in for GPT2 + PEFT weights).
# Per-layer tensors are stacked on a leading [N_LAYERS, ...] axis; weight
# matrices are stored bf16 (halves HBM traffic + VMEM double-buffers).
# ---------------------------------------------------------------------------
def init_params(key):
    def nrm(k, shape, std=0.02, dtype=jnp.float32):
        return (std * jax.random.normal(k, shape)).astype(dtype)

    ks = jax.random.split(key, 7)
    L, W = N_LAYERS, WEIGHT_DTYPE
    return {
        "wpe": nrm(ks[0], (N_POS, D)),
        "lnf_g": jnp.ones((1, D), jnp.float32),
        "lnf_b": jnp.zeros((1, D), jnp.float32),
        "ln1_g": jnp.ones((L, 1, D), jnp.float32),
        "ln1_b": jnp.zeros((L, 1, D), jnp.float32),
        "w_qkv": nrm(ks[1], (L, D, 3 * D), dtype=W),
        "b_qkv": jnp.zeros((L, 1, 3 * D), jnp.float32),
        "lora_a": nrm(ks[2], (L, D, LORA_R), dtype=W),
        # PEFT zero-inits lora_b; use a small nonzero init so the LoRA path is
        # actually exercised.  alpha/r scale folded in at "load" time.
        "lora_b": ((LORA_ALPHA / LORA_R)
                   * nrm(ks[3], (L, LORA_R, 3 * D), std=0.01)).astype(W),
        "w_attn_proj": nrm(ks[4], (L, D, D), dtype=W),
        "b_attn_proj": jnp.zeros((L, 1, D), jnp.float32),
        "ln2_g": jnp.ones((L, 1, D), jnp.float32),
        "ln2_b": jnp.zeros((L, 1, D), jnp.float32),
        "w_fc": nrm(ks[5], (L, D, MLP), dtype=W),
        "b_fc": jnp.zeros((L, 1, MLP), jnp.float32),
        "w_mlp_proj": nrm(ks[6], (L, MLP, D), dtype=W),
        "b_mlp_proj": jnp.zeros((L, 1, D), jnp.float32),
    }


if __name__ == "__main__":
    B, S = 4, 8                         # B // BTILE = 2 parallel grid steps
    key = jax.random.PRNGKey(0)
    kx, kadj, kp = jax.random.split(key, 3)

    x = (0.1 * jax.random.normal(kx, (B, S, D))).astype(jnp.float32)
    adjacency = jax.random.bernoulli(kadj, 0.5, (S, S)).astype(jnp.float32)
    params = init_params(kp)

    out = jax.block_until_ready(pfa_forward(x, adjacency, params))
    assert out.shape == (B, S, D)
    assert bool(jnp.all(jnp.isfinite(out)))

    ref = pfa_forward_ref(x, adjacency, params)
    err = float(jnp.max(jnp.abs(out - ref)))
    assert err < 5e-2, f"mismatch vs reference: max abs err = {err}"
    print("KERNEL_OK")
</pallas_src>

<mosaic_0001>
module attributes {stable_mosaic.version = 11 : i64} {
  func.func @pfa_fused_kernel(%arg0: i32, %arg1: i32, %arg2: memref<2x8x32xf32, #tpu.memory_space<vmem>>, %arg3: memref<8x32xf32, #tpu.memory_space<vmem>>, %arg4: memref<32x8xf32, #tpu.memory_space<vmem>>, %arg5: memref<4x8x32xf32, #tpu.memory_space<vmem>>, %arg6: memref<1x1x32xf32, #tpu.memory_space<vmem>>, %arg7: memref<1x1x32xf32, #tpu.memory_space<vmem>>, %arg8: memref<1x32x96xbf16, #tpu.memory_space<vmem>>, %arg9: memref<1x1x96xf32, #tpu.memory_space<vmem>>, %arg10: memref<1x32x16xbf16, #tpu.memory_space<vmem>>, %arg11: memref<1x16x96xbf16, #tpu.memory_space<vmem>>, %arg12: memref<1x32x32xbf16, #tpu.memory_space<vmem>>, %arg13: memref<1x1x32xf32, #tpu.memory_space<vmem>>, %arg14: memref<1x1x32xf32, #tpu.memory_space<vmem>>, %arg15: memref<1x1x32xf32, #tpu.memory_space<vmem>>, %arg16: memref<1x32x128xbf16, #tpu.memory_space<vmem>>, %arg17: memref<1x1x128xf32, #tpu.memory_space<vmem>>, %arg18: memref<1x128x32xbf16, #tpu.memory_space<vmem>>, %arg19: memref<1x1x32xf32, #tpu.memory_space<vmem>>, %arg20: memref<1x32xf32, #tpu.memory_space<vmem>>, %arg21: memref<1x32xf32, #tpu.memory_space<vmem>>, %arg22: memref<2x8x32xf32, #tpu.memory_space<vmem>>, %arg23: memref<16x32xf32, #tpu.memory_space<vmem>>) attributes {dimension_semantics = [#tpu.dimension_semantics<parallel>, #tpu.dimension_semantics<arbitrary>], iteration_bounds = array<i64: 2, 2>, scalar_prefetch = 0 : i64, scratch_operands = 1 : i64, tpu.core_type = #tpu.core_type<tc>, window_params = [{transform_indices = @transform_0, window_bounds = array<i64: 2, 8, 32>}, {pipeline_mode = #tpu.pipeline_mode<synchronous>, transform_indices = @transform_1, window_bounds = array<i64: 8, 32>}, {pipeline_mode = #tpu.pipeline_mode<synchronous>, transform_indices = @transform_2, window_bounds = array<i64: 32, 8>}, {pipeline_mode = #tpu.pipeline_mode<synchronous>, transform_indices = @transform_3, window_bounds = array<i64: 4, 8, 32>}, {transform_indices = @transform_4, window_bounds = array<i64: 1, 1, 32>}, {transform_indices = @transform_5, window_bounds = array<i64: 1, 1, 32>}, {transform_indices = @transform_6, window_bounds = array<i64: 1, 32, 96>}, {transform_indices = @transform_7, window_bounds = array<i64: 1, 1, 96>}, {transform_indices = @transform_8, window_bounds = array<i64: 1, 32, 16>}, {transform_indices = @transform_9, window_bounds = array<i64: 1, 16, 96>}, {transform_indices = @transform_10, window_bounds = array<i64: 1, 32, 32>}, {transform_indices = @transform_11, window_bounds = array<i64: 1, 1, 32>}, {transform_indices = @transform_12, window_bounds = array<i64: 1, 1, 32>}, {transform_indices = @transform_13, window_bounds = array<i64: 1, 1, 32>}, {transform_indices = @transform_14, window_bounds = array<i64: 1, 32, 128>}, {transform_indices = @transform_15, window_bounds = array<i64: 1, 1, 128>}, {transform_indices = @transform_16, window_bounds = array<i64: 1, 128, 32>}, {transform_indices = @transform_17, window_bounds = array<i64: 1, 1, 32>}, {pipeline_mode = #tpu.pipeline_mode<synchronous>, transform_indices = @transform_18, window_bounds = array<i64: 1, 32>}, {pipeline_mode = #tpu.pipeline_mode<synchronous>, transform_indices = @transform_19, window_bounds = array<i64: 1, 32>}, {transform_indices = @transform_20, window_bounds = array<i64: 2, 8, 32>}]} {
    %c0_i32 = arith.constant 0 : i32
    %0 = arith.cmpi eq, %arg1, %c0_i32 : i32
    %1 = arith.extui %0 : i1 to i32
    %c0_i32_0 = arith.constant 0 : i32
    %2 = arith.cmpi ne, %1, %c0_i32_0 : i32
    scf.if %2 {
      %c0_77 = arith.constant 0 : index
      %c0_78 = arith.constant 0 : index
      %c0_79 = arith.constant 0 : index
      %158 = vector.load %arg2[%c0_77, %c0_78, %c0_79] : memref<2x8x32xf32, #tpu.memory_space<vmem>>, vector<2x8x32xf32>
      %c0_80 = arith.constant 0 : index
      %c0_81 = arith.constant 0 : index
      %159 = vector.load %arg3[%c0_80, %c0_81] : memref<8x32xf32, #tpu.memory_space<vmem>>, vector<8x32xf32>
      %160 = vector.shape_cast %159 : vector<8x32xf32> to vector<1x8x32xf32>
      %161 = vector.broadcast %160 : vector<1x8x32xf32> to vector<2x8x32xf32>
      %162 = arith.addf %158, %161 : vector<2x8x32xf32>
      %163 = vector.shape_cast %162 : vector<2x8x32xf32> to vector<16x32xf32>
      %c0_82 = arith.constant 0 : index
      %c0_83 = arith.constant 0 : index
      %164 = vector.load %arg23[%c0_82, %c0_83] : memref<16x32xf32, #tpu.memory_space<vmem>>, vector<16x32xf32>
      tpu.vector_store %arg23[%c0_82, %c0_83], %163 {strides = array<i32>} : memref<16x32xf32, #tpu.memory_space<vmem>>, vector<16x32xf32>,
    } else {
    }
    %c0 = arith.constant 0 : index
    %c0_1 = arith.constant 0 : index
    %3 = vector.load %arg23[%c0, %c0_1] : memref<16x32xf32, #tpu.memory_space<vmem>>, vector<16x32xf32>
    %c0_2 = arith.constant 0 : index
    %c0_3 = arith.constant 0 : index
    %4 = vector.load %arg4[%c0_2, %c0_3] : memref<32x8xf32, #tpu.memory_space<vmem>>, vector<32x8xf32>
    %c0_4 = arith.constant 0 : index
    %c0_5 = arith.constant 0 : index
    %c0_6 = arith.constant 0 : index
    %5 = vector.load %arg5[%c0_4, %c0_5, %c0_6] : memref<4x8x32xf32, #tpu.memory_space<vmem>>, vector<4x8x32xf32>
    %c0_7 = arith.constant 0 : index
    %c0_8 = arith.constant 0 : index
    %c0_9 = arith.constant 0 : index
    %6 = vector.load %arg6[%c0_7, %c0_8, %c0_9] : memref<1x1x32xf32, #tpu.memory_space<vmem>>, vector<1x1x32xf32>
    %7 = vector.shape_cast %6 : vector<1x1x32xf32> to vector<1x32xf32>
    %c0_10 = arith.constant 0 : index
    %c0_11 = arith.constant 0 : index
    %c0_12 = arith.constant 0 : index
    %8 = vector.load %arg7[%c0_10, %c0_11, %c0_12] : memref<1x1x32xf32, #tpu.memory_space<vmem>>, vector<1x1x32xf32>
    %9 = vector.shape_cast %8 : vector<1x1x32xf32> to vector<1x32xf32>
    %cst = arith.constant dense<0.000000e+00> : vector<16xf32>
    %10 = vector.multi_reduction <add>, %3, %cst [1] : vector<16x32xf32> to vector<16xf32>
    %11 = vector.shape_cast %10 : vector<16xf32> to vector<16x1xf32>
    %cst_13 = arith.constant 3.200000e+01 : f32
    %12 = vector.broadcast %cst_13 : f32 to vector<16x1xf32>
    %13 = arith.divf %11, %12 : vector<16x1xf32>
    %14 = vector.broadcast %13 : vector<16x1xf32> to vector<16x32xf32>
    %15 = arith.subf %3, %14 : vector<16x32xf32>
    %16 = arith.mulf %15, %15 : vector<16x32xf32>
    %cst_14 = arith.constant dense<0.000000e+00> : vector<16xf32>
    %17 = vector.multi_reduction <add>, %16, %cst_14 [1] : vector<16x32xf32> to vector<16xf32>
    %18 = vector.shape_cast %17 : vector<16xf32> to vector<16x1xf32>
    %cst_15 = arith.constant 3.200000e+01 : f32
    %19 = vector.broadcast %cst_15 : f32 to vector<16x1xf32>
    %20 = arith.divf %18, %19 : vector<16x1xf32>
    %21 = vector.broadcast %13 : vector<16x1xf32> to vector<16x32xf32>
    %22 = arith.subf %3, %21 : vector<16x32xf32>
    %cst_16 = arith.constant 9.99999974E-6 : f32
    %23 = vector.broadcast %cst_16 : f32 to vector<16x1xf32>
    %24 = arith.addf %20, %23 : vector<16x1xf32>
    %25 = math.rsqrt %24 : vector<16x1xf32>
    %26 = vector.broadcast %25 : vector<16x1xf32> to vector<16x32xf32>
    %27 = arith.mulf %22, %26 : vector<16x32xf32>
    %28 = vector.broadcast %7 : vector<1x32xf32> to vector<16x32xf32>
    %29 = arith.mulf %27, %28 : vector<16x32xf32>
    %30 = vector.broadcast %9 : vector<1x32xf32> to vector<16x32xf32>
    %31 = arith.addf %29, %30 : vector<16x32xf32>
    %c0_17 = arith.constant 0 : index
    %c0_18 = arith.constant 0 : index
    %c0_19 = arith.constant 0 : index
    %32 = vector.load %arg8[%c0_17, %c0_18, %c0_19] : memref<1x32x96xbf16, #tpu.memory_space<vmem>>, vector<1x32x96xbf16>
    %33 = vector.shape_cast %32 : vector<1x32x96xbf16> to vector<32x96xbf16>
    %34 = arith.truncf %31 : vector<16x32xf32> to vector<16x32xbf16>
    %cst_20 = arith.constant dense<0.000000e+00> : vector<16x96xf32>
    %35 = tpu.matmul %34, %33, %cst_20 {dimension_numbers = #tpu.dot_dimension_numbers<[1], [0], [0], [1], [0, 0, 1, 1], [], []>} : vector<16x32xbf16>, vector<32x96xbf16>, vector<16x96xf32> -> vector<16x96xf32>
    %c0_21 = arith.constant 0 : index
    %c0_22 = arith.constant 0 : index
    %c0_23 = arith.constant 0 : index
    %36 = vector.load %arg9[%c0_21, %c0_22, %c0_23] : memref<1x1x96xf32, #tpu.memory_space<vmem>>, vector<1x1x96xf32>
    %37 = vector.shape_cast %36 : vector<1x1x96xf32> to vector<1x96xf32>
    %38 = vector.broadcast %37 : vector<1x96xf32> to vector<16x96xf32>
    %39 = arith.addf %35, %38 : vector<16x96xf32>
    %c0_24 = arith.constant 0 : index
    %c0_25 = arith.constant 0 : index
    %c0_26 = arith.constant 0 : index
    %40 = vector.load %arg10[%c0_24, %c0_25, %c0_26] : memref<1x32x16xbf16, #tpu.memory_space<vmem>>, vector<1x32x16xbf16>
    %41 = vector.shape_cast %40 : vector<1x32x16xbf16> to vector<32x16xbf16>
    %42 = arith.truncf %31 : vector<16x32xf32> to vector<16x32xbf16>
    %cst_27 = arith.constant dense<0.000000e+00> : vector<16x16xf32>
    %43 = tpu.matmul %42, %41, %cst_27 {dimension_numbers = #tpu.dot_dimension_numbers<[1], [0], [0], [1], [0, 0, 1, 1], [], []>} : vector<16x32xbf16>, vector<32x16xbf16>, vector<16x16xf32> -> vector<16x16xf32>
    %c0_28 = arith.constant 0 : index
    %c0_29 = arith.constant 0 : index
    %c0_30 = arith.constant 0 : index
    %44 = vector.load %arg11[%c0_28, %c0_29, %c0_30] : memref<1x16x96xbf16, #tpu.memory_space<vmem>>, vector<1x16x96xbf16>
    %45 = vector.shape_cast %44 : vector<1x16x96xbf16> to vector<16x96xbf16>
    %46 = arith.truncf %43 : vector<16x16xf32> to vector<16x16xbf16>
    %cst_31 = arith.constant dense<0.000000e+00> : vector<16x96xf32>
    %47 = tpu.matmul %46, %45, %cst_31 {dimension_numbers = #tpu.dot_dimension_numbers<[1], [0], [0], [1], [0, 0, 1, 1], [], []>} : vector<16x16xbf16>, vector<16x96xbf16>, vector<16x96xf32> -> vector<16x96xf32>
    %48 = arith.addf %39, %47 : vector<16x96xf32>
    %49 = vector.extract_strided_slice %48 {offsets = [0, 0], sizes = [16, 32], strides = [1, 1]} : vector<16x96xf32> to vector<16x32xf32>
    %cst_32 = arith.constant 0.353553385 : f32
    %50 = vector.broadcast %cst_32 : f32 to vector<16x32xf32>
    %51 = arith.mulf %49, %50 : vector<16x32xf32>
    %52 = vector.extract_strided_slice %48 {offsets = [0, 32], sizes = [16, 32], strides = [1, 1]} : vector<16x96xf32> to vector<16x32xf32>
    %53 = vector.extract_strided_slice %48 {offsets = [0, 64], sizes = [16, 32], strides = [1, 1]} : vector<16x96xf32> to vector<16x32xf32>
    %54 = vector.shape_cast %51 : vector<16x32xf32> to vector<2x8x32xf32>
    %55 = vector.shape_cast %52 : vector<16x32xf32> to vector<2x8x32xf32>
    %56 = vector.shape_cast %53 : vector<16x32xf32> to vector<2x8x32xf32>
    %57 = vector.shape_cast %54 : vector<2x8x32xf32> to vector<2x1x8x32xf32>
    %58 = vector.shape_cast %5 : vector<4x8x32xf32> to vector<1x4x8x32xf32>
    %59 = vector.broadcast %57 : vector<2x1x8x32xf32> to vector<2x4x8x32xf32>
    %60 = vector.broadcast %58 : vector<1x4x8x32xf32> to vector<2x4x8x32xf32>
    %61 = arith.mulf %59, %60 : vector<2x4x8x32xf32>
    %62 = vector.shape_cast %61 : vector<2x4x8x32xf32> to vector<2x32x32xf32>
    %63 = arith.truncf %62 : vector<2x32x32xf32> to vector<2x32x32xbf16>
    %64 = arith.truncf %55 : vector<2x8x32xf32> to vector<2x8x32xbf16>
    "tpu.trace_start"() <{level = 10 : i32, message = "bmd,bkd->bmk"}> : () -> ()
    %cst_33 = arith.constant dense<0.000000e+00> : vector<2x32x8xf32>
    %65 = tpu.matmul %63, %64, %cst_33 {dimension_numbers = #tpu.dot_dimension_numbers<[2], [2], [1], [1], [0, 0, 0, 1, 1, 1], [0], [0]>} : vector<2x32x32xbf16>, vector<2x8x32xbf16>, vector<2x32x8xf32> -> vector<2x32x8xf32>
    "tpu.trace_stop"() : () -> ()
    %66 = vector.shape_cast %4 : vector<32x8xf32> to vector<1x32x8xf32>
    %67 = vector.broadcast %66 : vector<1x32x8xf32> to vector<2x32x8xf32>
    %68 = arith.addf %65, %67 : vector<2x32x8xf32>
    %cst_34 = arith.constant dense<0xFF800000> : vector<2x32xf32>
    %69 = vector.multi_reduction <maximumf>, %68, %cst_34 [2] : vector<2x32x8xf32> to vector<2x32xf32>
    %70 = vector.shape_cast %69 : vector<2x32xf32> to vector<2x32x1xf32>
    %71 = vector.broadcast %70 : vector<2x32x1xf32> to vector<2x32x8xf32>
    %72 = arith.subf %68, %71 : vector<2x32x8xf32>
    %73 = math.exp %72 : vector<2x32x8xf32>
    %cst_35 = arith.constant dense<0.000000e+00> : vector<2x32xf32>
    %74 = vector.multi_reduction <add>, %73, %cst_35 [2] : vector<2x32x8xf32> to vector<2x32xf32>
    %75 = vector.shape_cast %74 : vector<2x32xf32> to vector<2x32x1xf32>
    %76 = tpu.reciprocal %75 {approx = true} : vector<2x32x1xf32> -> vector<2x32x1xf32>
    %77 = vector.broadcast %76 : vector<2x32x1xf32> to vector<2x32x8xf32>
    %78 = arith.mulf %73, %77 : vector<2x32x8xf32>
    %79 = arith.truncf %78 : vector<2x32x8xf32> to vector<2x32x8xbf16>
    %80 = arith.truncf %56 : vector<2x8x32xf32> to vector<2x8x32xbf16>
    "tpu.trace_start"() <{level = 10 : i32, message = "bmk,bkd->bmd"}> : () -> ()
    %cst_36 = arith.constant dense<0.000000e+00> : vector<2x32x32xf32>
    %81 = tpu.matmul %79, %80, %cst_36 {dimension_numbers = #tpu.dot_dimension_numbers<[2], [1], [1], [2], [0, 0, 0, 1, 1, 2], [0], [0]>} : vector<2x32x8xbf16>, vector<2x8x32xbf16>, vector<2x32x32xf32> -> vector<2x32x32xf32>
    "tpu.trace_stop"() : () -> ()
    %82 = vector.shape_cast %81 : vector<2x32x32xf32> to vector<2x4x8x32xf32>
    %83 = vector.shape_cast %5 : vector<4x8x32xf32> to vector<1x4x8x32xf32>
    %84 = vector.broadcast %83 : vector<1x4x8x32xf32> to vector<2x4x8x32xf32>
    %85 = arith.mulf %82, %84 : vector<2x4x8x32xf32>
    %cst_37 = arith.constant dense<0.000000e+00> : vector<2x8x32xf32>
    %86 = vector.multi_reduction <add>, %85, %cst_37 [1] : vector<2x4x8x32xf32> to vector<2x8x32xf32>
    %87 = vector.shape_cast %86 : vector<2x8x32xf32> to vector<16x32xf32>
    %c0_38 = arith.constant 0 : index
    %c0_39 = arith.constant 0 : index
    %c0_40 = arith.constant 0 : index
    %88 = vector.load %arg12[%c0_38, %c0_39, %c0_40] : memref<1x32x32xbf16, #tpu.memory_space<vmem>>, vector<1x32x32xbf16>
    %89 = vector.shape_cast %88 : vector<1x32x32xbf16> to vector<32x32xbf16>
    %90 = arith.truncf %87 : vector<16x32xf32> to vector<16x32xbf16>
    %cst_41 = arith.constant dense<0.000000e+00> : vector<16x32xf32>
    %91 = tpu.matmul %90, %89, %cst_41 {dimension_numbers = #tpu.dot_dimension_numbers<[1], [0], [0], [1], [0, 0, 1, 1], [], []>} : vector<16x32xbf16>, vector<32x32xbf16>, vector<16x32xf32> -> vector<16x32xf32>
    %92 = arith.addf %3, %91 : vector<16x32xf32>
    %c0_42 = arith.constant 0 : index
    %c0_43 = arith.constant 0 : index
    %c0_44 = arith.constant 0 : index
    %93 = vector.load %arg13[%c0_42, %c0_43, %c0_44] : memref<1x1x32xf32, #tpu.memory_space<vmem>>, vector<1x1x32xf32>
    %94 = vector.shape_cast %93 : vector<1x1x32xf32> to vector<1x32xf32>
    %95 = vector.broadcast %94 : vector<1x32xf32> to vector<16x32xf32>
    %96 = arith.addf %92, %95 : vector<16x32xf32>
    %c0_45 = arith.constant 0 : index
    %c0_46 = arith.constant 0 : index
    %c0_47 = arith.constant 0 : index
    %97 = vector.load %arg14[%c0_45, %c0_46, %c0_47] : memref<1x1x32xf32, #tpu.memory_space<vmem>>, vector<1x1x32xf32>
    %98 = vector.shape_cast %97 : vector<1x1x32xf32> to vector<1x32xf32>
    %c0_48 = arith.constant 0 : index
    %c0_49 = arith.constant 0 : index
    %c0_50 = arith.constant 0 : index
    %99 = vector.load %arg15[%c0_48, %c0_49, %c0_50] : memref<1x1x32xf32, #tpu.memory_space<vmem>>, vector<1x1x32xf32>
    %100 = vector.shape_cast %99 : vector<1x1x32xf32> to vector<1x32xf32>
    %cst_51 = arith.constant dense<0.000000e+00> : vector<16xf32>
    %101 = vector.multi_reduction <add>, %96, %cst_51 [1] : vector<16x32xf32> to vector<16xf32>
    %102 = vector.shape_cast %101 : vector<16xf32> to vector<16x1xf32>
    %cst_52 = arith.constant 3.200000e+01 : f32
    %103 = vector.broadcast %cst_52 : f32 to vector<16x1xf32>
    %104 = arith.divf %102, %103 : vector<16x1xf32>
    %105 = vector.broadcast %104 : vector<16x1xf32> to vector<16x32xf32>
    %106 = arith.subf %96, %105 : vector<16x32xf32>
    %107 = arith.mulf %106, %106 : vector<16x32xf32>
    %cst_53 = arith.constant dense<0.000000e+00> : vector<16xf32>
    %108 = vector.multi_reduction <add>, %107, %cst_53 [1] : vector<16x32xf32> to vector<16xf32>
    %109 = vector.shape_cast %108 : vector<16xf32> to vector<16x1xf32>
    %cst_54 = arith.constant 3.200000e+01 : f32
    %110 = vector.broadcast %cst_54 : f32 to vector<16x1xf32>
    %111 = arith.divf %109, %110 : vector<16x1xf32>
    %112 = vector.broadcast %104 : vector<16x1xf32> to vector<16x32xf32>
    %113 = arith.subf %96, %112 : vector<16x32xf32>
    %cst_55 = arith.constant 9.99999974E-6 : f32
    %114 = vector.broadcast %cst_55 : f32 to vector<16x1xf32>
    %115 = arith.addf %111, %114 : vector<16x1xf32>
    %116 = math.rsqrt %115 : vector<16x1xf32>
    %117 = vector.broadcast %116 : vector<16x1xf32> to vector<16x32xf32>
    %118 = arith.mulf %113, %117 : vector<16x32xf32>
    %119 = vector.broadcast %98 : vector<1x32xf32> to vector<16x32xf32>
    %120 = arith.mulf %118, %119 : vector<16x32xf32>
    %121 = vector.broadcast %100 : vector<1x32xf32> to vector<16x32xf32>
    %122 = arith.addf %120, %121 : vector<16x32xf32>
    %c0_56 = arith.constant 0 : index
    %c0_57 = arith.constant 0 : index
    %c0_58 = arith.constant 0 : index
    %123 = vector.load %arg16[%c0_56, %c0_57, %c0_58] : memref<1x32x128xbf16, #tpu.memory_space<vmem>>, vector<1x32x128xbf16>
    %124 = vector.shape_cast %123 : vector<1x32x128xbf16> to vector<32x128xbf16>
    %125 = arith.truncf %122 : vector<16x32xf32> to vector<16x32xbf16>
    %cst_59 = arith.constant dense<0.000000e+00> : vector<16x128xf32>
    %126 = tpu.matmul %125, %124, %cst_59 {dimension_numbers = #tpu.dot_dimension_numbers<[1], [0], [0], [1], [0, 0, 1, 1], [], []>} : vector<16x32xbf16>, vector<32x128xbf16>, vector<16x128xf32> -> vector<16x128xf32>
    %c0_60 = arith.constant 0 : index
    %c0_61 = arith.constant 0 : index
    %c0_62 = arith.constant 0 : index
    %127 = vector.load %arg17[%c0_60, %c0_61, %c0_62] : memref<1x1x128xf32, #tpu.memory_space<vmem>>, vector<1x1x128xf32>
    %128 = vector.shape_cast %127 : vector<1x1x128xf32> to vector<1x128xf32>
    %129 = vector.broadcast %128 : vector<1x128xf32> to vector<16x128xf32>
    %130 = arith.addf %126, %129 : vector<16x128xf32>
    %cst_63 = arith.constant 5.000000e-01 : f32
    %131 = vector.broadcast %cst_63 : f32 to vector<16x128xf32>
    %132 = arith.mulf %131, %130 : vector<16x128xf32>
    %cst_64 = arith.constant 0.636619746 : f32
    %133 = math.sqrt %cst_64 : f32
    %cst_65 = arith.constant 4.471500e-02 : f32
    %134 = vector.broadcast %cst_65 : f32 to vector<16x128xf32>
    %135 = arith.mulf %134, %130 : vector<16x128xf32>
    %136 = arith.mulf %135, %130 : vector<16x128xf32>
    %137 = arith.mulf %136, %130 : vector<16x128xf32>
    %138 = arith.addf %130, %137 : vector<16x128xf32>
    %139 = vector.broadcast %133 : f32 to vector<16x128xf32>
    %140 = arith.mulf %139, %138 : vector<16x128xf32>
    %141 = math.tanh %140 : vector<16x128xf32>
    %cst_66 = arith.constant 1.000000e+00 : f32
    %142 = vector.broadcast %cst_66 : f32 to vector<16x128xf32>
    %143 = arith.addf %142, %141 : vector<16x128xf32>
    %144 = arith.mulf %132, %143 : vector<16x128xf32>
    %c0_67 = arith.constant 0 : index
    %c0_68 = arith.constant 0 : index
    %c0_69 = arith.constant 0 : index
    %145 = vector.load %arg18[%c0_67, %c0_68, %c0_69] : memref<1x128x32xbf16, #tpu.memory_space<vmem>>, vector<1x128x32xbf16>
    %146 = vector.shape_cast %145 : vector<1x128x32xbf16> to vector<128x32xbf16>
    %147 = arith.truncf %144 : vector<16x128xf32> to vector<16x128xbf16>
    %cst_70 = arith.constant dense<0.000000e+00> : vector<16x32xf32>
    %148 = tpu.matmul %147, %146, %cst_70 {dimension_numbers = #tpu.dot_dimension_numbers<[1], [0], [0], [1], [0, 0, 1, 1], [], []>} : vector<16x128xbf16>, vector<128x32xbf16>, vector<16x32xf32> -> vector<16x32xf32>
    %149 = arith.addf %96, %148 : vector<16x32xf32>
    %c0_71 = arith.constant 0 : index
    %c0_72 = arith.constant 0 : index
    %c0_73 = arith.constant 0 : index
    %150 = vector.load %arg19[%c0_71, %c0_72, %c0_73] : memref<1x1x32xf32, #tpu.memory_space<vmem>>, vector<1x1x32xf32>
    %151 = vector.shape_cast %150 : vector<1x1x32xf32> to vector<1x32xf32>
    %152 = vector.broadcast %151 : vector<1x32xf32> to vector<16x32xf32>
    %153 = arith.addf %149, %152 : vector<16x32xf32>
    %c0_74 = arith.constant 0 : index
    %c0_75 = arith.constant 0 : index
    %154 = vector.load %arg23[%c0_74, %c0_75] : memref<16x32xf32, #tpu.memory_space<vmem>>, vector<16x32xf32>
    tpu.vector_store %arg23[%c0_74, %c0_75], %153 {strides = array<i32>} : memref<16x32xf32, #tpu.memory_space<vmem>>, vector<16x32xf32>,
    %c1_i32 = arith.constant 1 : i32
    %155 = arith.cmpi eq, %arg1, %c1_i32 : i32
    %156 = arith.extui %155 : i1 to i32
    %c0_i32_76 = arith.constant 0 : i32
    %157 = arith.cmpi ne, %156, %c0_i32_76 : i32
    scf.if %157 {
      %c0_77 = arith.constant 0 : index
      %c0_78 = arith.constant 0 : index
      %158 = vector.load %arg20[%c0_77, %c0_78] : memref<1x32xf32, #tpu.memory_space<vmem>>, vector<1x32xf32>
      %c0_79 = arith.constant 0 : index
      %c0_80 = arith.constant 0 : index
      %159 = vector.load %arg21[%c0_79, %c0_80] : memref<1x32xf32, #tpu.memory_space<vmem>>, vector<1x32xf32>
      %cst_81 = arith.constant dense<0.000000e+00> : vector<16xf32>
      %160 = vector.multi_reduction <add>, %153, %cst_81 [1] : vector<16x32xf32> to vector<16xf32>
      %161 = vector.shape_cast %160 : vector<16xf32> to vector<16x1xf32>
      %cst_82 = arith.constant 3.200000e+01 : f32
      %162 = vector.broadcast %cst_82 : f32 to vector<16x1xf32>
      %163 = arith.divf %161, %162 : vector<16x1xf32>
      %164 = vector.broadcast %163 : vector<16x1xf32> to vector<16x32xf32>
      %165 = arith.subf %153, %164 : vector<16x32xf32>
      %166 = arith.mulf %165, %165 : vector<16x32xf32>
      %cst_83 = arith.constant dense<0.000000e+00> : vector<16xf32>
      %167 = vector.multi_reduction <add>, %166, %cst_83 [1] : vector<16x32xf32> to vector<16xf32>
      %168 = vector.shape_cast %167 : vector<16xf32> to vector<16x1xf32>
      %cst_84 = arith.constant 3.200000e+01 : f32
      %169 = vector.broadcast %cst_84 : f32 to vector<16x1xf32>
      %170 = arith.divf %168, %169 : vector<16x1xf32>
      %171 = vector.broadcast %163 : vector<16x1xf32> to vector<16x32xf32>
      %172 = arith.subf %153, %171 : vector<16x32xf32>
      %cst_85 = arith.constant 9.99999974E-6 : f32
      %173 = vector.broadcast %cst_85 : f32 to vector<16x1xf32>
      %174 = arith.addf %170, %173 : vector<16x1xf32>
      %175 = math.rsqrt %174 : vector<16x1xf32>
      %176 = vector.broadcast %175 : vector<16x1xf32> to vector<16x32xf32>
      %177 = arith.mulf %172, %176 : vector<16x32xf32>
      %178 = vector.broadcast %158 : vector<1x32xf32> to vector<16x32xf32>
      %179 = arith.mulf %177, %178 : vector<16x32xf32>
      %180 = vector.broadcast %159 : vector<1x32xf32> to vector<16x32xf32>
      %181 = arith.addf %179, %180 : vector<16x32xf32>
      %182 = vector.shape_cast %181 : vector<16x32xf32> to vector<2x8x32xf32>
      %c0_86 = arith.constant 0 : index
      %c0_87 = arith.constant 0 : index
      %c0_88 = arith.constant 0 : index
      %183 = vector.load %arg22[%c0_86, %c0_87, %c0_88] : memref<2x8x32xf32, #tpu.memory_space<vmem>>, vector<2x8x32xf32>
      tpu.vector_store %arg22[%c0_86, %c0_87, %c0_88], %182 {strides = array<i32>} : memref<2x8x32xf32, #tpu.memory_space<vmem>>, vector<2x8x32xf32>,
    } else {
    }
    return
  }
  func.func @transform_0(%arg0: i32, %arg1: i32) -> (i32, i32, i32) {
    %c0_i32 = arith.constant 0 : i32
    %c0_i32_0 = arith.constant 0 : i32
    %c0_i32_1 = arith.constant 0 : i32
    return %arg0, %c0_i32, %c0_i32_0 : i32, i32, i32
  }
  func.func @transform_1(%arg0: i32, %arg1: i32) -> (i32, i32) {
    %c0_i32 = arith.constant 0 : i32
    %c0_i32_0 = arith.constant 0 : i32
    %c0_i32_1 = arith.constant 0 : i32
    return %c0_i32, %c0_i32_0 : i32, i32
  }
  func.func @transform_2(%arg0: i32, %arg1: i32) -> (i32, i32) {
    %c0_i32 = arith.constant 0 : i32
    %c0_i32_0 = arith.constant 0 : i32
    %c0_i32_1 = arith.constant 0 : i32
    return %c0_i32, %c0_i32_0 : i32, i32
  }
  func.func @transform_3(%arg0: i32, %arg1: i32) -> (i32, i32, i32) {
    %c0_i32 = arith.constant 0 : i32
    %c0_i32_0 = arith.constant 0 : i32
    %c0_i32_1 = arith.constant 0 : i32
    %c0_i32_2 = arith.constant 0 : i32
    return %c0_i32, %c0_i32_0, %c0_i32_1 : i32, i32, i32
  }
  func.func @transform_4(%arg0: i32, %arg1: i32) -> (i32, i32, i32) {
    %c0_i32 = arith.constant 0 : i32
    %c0_i32_0 = arith.constant 0 : i32
    %c0_i32_1 = arith.constant 0 : i32
    return %arg1, %c0_i32, %c0_i32_0 : i32, i32, i32
  }
  func.func @transform_5(%arg0: i32, %arg1: i32) -> (i32, i32, i32) {
    %c0_i32 = arith.constant 0 : i32
    %c0_i32_0 = arith.constant 0 : i32
    %c0_i32_1 = arith.constant 0 : i32
    return %arg1, %c0_i32, %c0_i32_0 : i32, i32, i32
  }
  func.func @transform_6(%arg0: i32, %arg1: i32) -> (i32, i32, i32) {
    %c0_i32 = arith.constant 0 : i32
    %c0_i32_0 = arith.constant 0 : i32
    %c0_i32_1 = arith.constant 0 : i32
    return %arg1, %c0_i32, %c0_i32_0 : i32, i32, i32
  }
  func.func @transform_7(%arg0: i32, %arg1: i32) -> (i32, i32, i32) {
    %c0_i32 = arith.constant 0 : i32
    %c0_i32_0 = arith.constant 0 : i32
    %c0_i32_1 = arith.constant 0 : i32
    return %arg1, %c0_i32, %c0_i32_0 : i32, i32, i32
  }
  func.func @transform_8(%arg0: i32, %arg1: i32) -> (i32, i32, i32) {
    %c0_i32 = arith.constant 0 : i32
    %c0_i32_0 = arith.constant 0 : i32
    %c0_i32_1 = arith.constant 0 : i32
    return %arg1, %c0_i32, %c0_i32_0 : i32, i32, i32
  }
  func.func @transform_9(%arg0: i32, %arg1: i32) -> (i32, i32, i32) {
    %c0_i32 = arith.constant 0 : i32
    %c0_i32_0 = arith.constant 0 : i32
    %c0_i32_1 = arith.constant 0 : i32
    return %arg1, %c0_i32, %c0_i32_0 : i32, i32, i32
  }
  func.func @transform_10(%arg0: i32, %arg1: i32) -> (i32, i32, i32) {
    %c0_i32 = arith.constant 0 : i32
    %c0_i32_0 = arith.constant 0 : i32
    %c0_i32_1 = arith.constant 0 : i32
    return %arg1, %c0_i32, %c0_i32_0 : i32, i32, i32
  }
  func.func @transform_11(%arg0: i32, %arg1: i32) -> (i32, i32, i32) {
    %c0_i32 = arith.constant 0 : i32
    %c0_i32_0 = arith.constant 0 : i32
    %c0_i32_1 = arith.constant 0 : i32
    return %arg1, %c0_i32, %c0_i32_0 : i32, i32, i32
  }
  func.func @transform_12(%arg0: i32, %arg1: i32) -> (i32, i32, i32) {
    %c0_i32 = arith.constant 0 : i32
    %c0_i32_0 = arith.constant 0 : i32
    %c0_i32_1 = arith.constant 0 : i32
    return %arg1, %c0_i32, %c0_i32_0 : i32, i32, i32
  }
  func.func @transform_13(%arg0: i32, %arg1: i32) -> (i32, i32, i32) {
    %c0_i32 = arith.constant 0 : i32
    %c0_i32_0 = arith.constant 0 : i32
    %c0_i32_1 = arith.constant 0 : i32
    return %arg1, %c0_i32, %c0_i32_0 : i32, i32, i32
  }
  func.func @transform_14(%arg0: i32, %arg1: i32) -> (i32, i32, i32) {
    %c0_i32 = arith.constant 0 : i32
    %c0_i32_0 = arith.constant 0 : i32
    %c0_i32_1 = arith.constant 0 : i32
    return %arg1, %c0_i32, %c0_i32_0 : i32, i32, i32
  }
  func.func @transform_15(%arg0: i32, %arg1: i32) -> (i32, i32, i32) {
    %c0_i32 = arith.constant 0 : i32
    %c0_i32_0 = arith.constant 0 : i32
    %c0_i32_1 = arith.constant 0 : i32
    return %arg1, %c0_i32, %c0_i32_0 : i32, i32, i32
  }
  func.func @transform_16(%arg0: i32, %arg1: i32) -> (i32, i32, i32) {
    %c0_i32 = arith.constant 0 : i32
    %c0_i32_0 = arith.constant 0 : i32
    %c0_i32_1 = arith.constant 0 : i32
    return %arg1, %c0_i32, %c0_i32_0 : i32, i32, i32
  }
  func.func @transform_17(%arg0: i32, %arg1: i32) -> (i32, i32, i32) {
    %c0_i32 = arith.constant 0 : i32
    %c0_i32_0 = arith.constant 0 : i32
    %c0_i32_1 = arith.constant 0 : i32
    return %arg1, %c0_i32, %c0_i32_0 : i32, i32, i32
  }
  func.func @transform_18(%arg0: i32, %arg1: i32) -> (i32, i32) {
    %c0_i32 = arith.constant 0 : i32
    %c0_i32_0 = arith.constant 0 : i32
    %c0_i32_1 = arith.constant 0 : i32
    return %c0_i32, %c0_i32_0 : i32, i32
  }
  func.func @transform_19(%arg0: i32, %arg1: i32) -> (i32, i32) {
    %c0_i32 = arith.constant 0 : i32
    %c0_i32_0 = arith.constant 0 : i32
    %c0_i32_1 = arith.constant 0 : i32
    return %c0_i32, %c0_i32_0 : i32, i32
  }
  func.func @transform_20(%arg0: i32, %arg1: i32) -> (i32, i32, i32) {
    %c0_i32 = arith.constant 0 : i32
    %c0_i32_0 = arith.constant 0 : i32
    %c0_i32_1 = arith.constant 0 : i32
    return %arg0, %c0_i32, %c0_i32_0 : i32, i32, i32
  }
}

</mosaic_0001>

<llo_original>
// kernel: pfa_forward.1
$region0: #{pfa_forward.1}
  #allocation0 [shape = 'u32[]', space=smem, size = 0x4, offset = 0x4, fixed_abs, tag = 'smem constant byte address 0x4 - core index']
  #allocation1 [shape = 'u32[72,128]{1,0:T(1,128)}', space=vmem, size = 0x9000, scoped, tag = 'internal scratch']
  #allocation2 [shape = 'f32[16,32]{1,0:T(8,128)}', space=vmem, size = 0x2000, scoped, tag = 'scratch operand']
  %s0 = inlined_call_operand.vmem [shape: f32[4,8,32], index: 0, kind: input, shape index: {}]
  %s1 = inlined_call_operand.vmem [shape: f32[8,32], index: 1, kind: input, shape index: {}]
  %s2 = inlined_call_operand.vmem [shape: f32[32,8], index: 2, kind: input, shape index: {}]
  %s3 = inlined_call_operand.vmem [shape: f32[4,8,32], index: 3, kind: input, shape index: {}]
  %s4 = inlined_call_operand.vmem [shape: f32[2,1,32], index: 4, kind: input, shape index: {}]
  %s5 = inlined_call_operand.vmem [shape: f32[2,1,32], index: 5, kind: input, shape index: {}]
  %s6 = inlined_call_operand.vmem [shape: bf16[2,32,96], index: 6, kind: input, shape index: {}]
  %s7 = inlined_call_operand.vmem [shape: f32[2,1,96], index: 7, kind: input, shape index: {}]
  %s8 = inlined_call_operand.vmem [shape: bf16[2,32,16], index: 8, kind: input, shape index: {}]
  %s9 = inlined_call_operand.vmem [shape: bf16[2,16,96], index: 9, kind: input, shape index: {}]
  %s10 = inlined_call_operand.vmem [shape: bf16[2,32,32], index: 10, kind: input, shape index: {}]
  %s11 = inlined_call_operand.vmem [shape: f32[2,1,32], index: 11, kind: input, shape index: {}]
  %s12 = inlined_call_operand.vmem [shape: f32[2,1,32], index: 12, kind: input, shape index: {}]
  %s13 = inlined_call_operand.vmem [shape: f32[2,1,32], index: 13, kind: input, shape index: {}]
  %s14 = inlined_call_operand.vmem [shape: bf16[2,32,128], index: 14, kind: input, shape index: {}]
  %s15 = inlined_call_operand.vmem [shape: f32[2,1,128], index: 15, kind: input, shape index: {}]
  %s16 = inlined_call_operand.vmem [shape: bf16[2,128,32], index: 16, kind: input, shape index: {}]
  %s17 = inlined_call_operand.vmem [shape: f32[2,1,32], index: 17, kind: input, shape index: {}]
  %s18 = inlined_call_operand.vmem [shape: f32[1,32], index: 18, kind: input, shape index: {}]
  %s19 = inlined_call_operand.vmem [shape: f32[1,32], index: 19, kind: input, shape index: {}]
  %s20 = inlined_call_operand.hbm [shape: f32[4,8,32], index: 20, kind: output, shape index: {}]
  %s21 = sld [smem:[#allocation0]]
  $region121: #{pfa_forward.1} parent=0
    _
  %s23 = ssub.s32 1, %s21
  %s24 = scalar_select 0, %s23, %s21
  $region1: #{pfa_forward.1} parent=0
    #allocation3 [shape = 'u8[16384]{0}', space=vmem, size = 0x4000, scoped, tag = 'output window, operand 0']
    #allocation4 [shape = 's32[2]{0}', space=sflag, size = 0x8, scoped, tag = 'scoped memory for pfa_forward.1']
    %25 = vsyncpa [#allocation4], 0
    %s26 = scalar_lea.sflag [#allocation4], 1
    %27 = vsyncpa %s26, 0
    loop: start=0, step=1, limit=6
    $region2: #{pfa_forward.1} parent=1 // loop_pre_header
      _
    $region3: #{pfa_forward.1} parent=1 // loop_header
      %s29 = sphi 0, %s33
      %p30 = scmp.ge.s32.totalorder %s29, 6
      %s36 = sphi 0, %s48
      %s37 = sphi 0, %s44
      %s38 = sphi 0, %s36
      %s39 = sphi 0, %s37
      %s40 = sphi 0, %s38
      %s41 = sphi 0, %s39
      %s51 = sphi 0, %s53
      %s54 = sphi 0, %s51
      %s55 = sphi 0, %s54
      %s71 = sphi 0, %s55
      %s75 = sphi 0, %s75
      %s77 = sphi 0, %s75
      %s78 = sphi 0, %s77
      %s92 = sphi 0, %s78
      %s96 = sphi 0, %s96
      %s98 = sphi 0, %s96
      %s99 = sphi 0, %s98
      %s113 = sphi 0, %s99
      %s117 = sphi 0, %s117
      %s119 = sphi 0, %s117
      %s120 = sphi 0, %s119
      %s134 = sphi 0, %s120
      %s140 = sphi 0, %s142
      %s143 = sphi 0, %s140
      %s144 = sphi 0, %s143
      %s160 = sphi 0, %s144
      %s166 = sphi 0, %s168
      %s169 = sphi 0, %s166
      %s170 = sphi 0, %s169
      %s186 = sphi 0, %s170
      %s192 = sphi 0, %s194
      %s195 = sphi 0, %s192
      %s196 = sphi 0, %s195
      %s212 = sphi 0, %s196
      %s218 = sphi 0, %s220
      %s221 = sphi 0, %s218
      %s222 = sphi 0, %s221
      %s238 = sphi 0, %s222
      %s244 = sphi 0, %s246
      %s247 = sphi 0, %s244
      %s248 = sphi 0, %s247
      %s264 = sphi 0, %s248
      %s270 = sphi 0, %s272
      %s273 = sphi 0, %s270
      %s274 = sphi 0, %s273
      %s290 = sphi 0, %s274
      %s296 = sphi 0, %s298
      %s299 = sphi 0, %s296
      %s300 = sphi 0, %s299
      %s316 = sphi 0, %s300
      %s322 = sphi 0, %s324
      %s325 = sphi 0, %s322
      %s326 = sphi 0, %s325
      %s342 = sphi 0, %s326
      %s348 = sphi 0, %s350
      %s351 = sphi 0, %s348
      %s352 = sphi 0, %s351
      %s368 = sphi 0, %s352
      %s374 = sphi 0, %s376
      %s377 = sphi 0, %s374
      %s378 = sphi 0, %s377
      %s394 = sphi 0, %s378
      %s400 = sphi 0, %s402
      %s403 = sphi 0, %s400
      %s404 = sphi 0, %s403
      %s420 = sphi 0, %s404
      %s426 = sphi 0, %s428
      %s429 = sphi 0, %s426
      %s430 = sphi 0, %s429
      %s446 = sphi 0, %s430
      %s452 = sphi 0, %s454
      %s455 = sphi 0, %s452
      %s456 = sphi 0, %s455
      %s472 = sphi 0, %s456
      %s478 = sphi 0, %s480
      %s481 = sphi 0, %s478
      %s482 = sphi 0, %s481
      %s498 = sphi 0, %s482
      %s502 = sphi 0, %s502
      %s504 = sphi 0, %s502
      %s505 = sphi 0, %s504
      %s519 = sphi 0, %s505
      %s523 = sphi 0, %s523
      %s525 = sphi 0, %s523
      %s526 = sphi 0, %s525
      %s540 = sphi 0, %s526
      %s546 = sphi 0, %s548
      %s549 = sphi 0, %s546
      %s550 = sphi 0, %s549
      %s566 = sphi 0, %s550
    $region4: #{pfa_forward.1} parent=1 // loop_header_branch
      %32 = sbr.rel (%p30) target = $region8
    $region5: #{pfa_forward.1} parent=1 // loop_body
      %s34 = ssub.s32 %s29, 1
      %s35 = ssub.s32 %s29, 2
      %s42 = sadd.s32 1, %s37
      %p43 = scmp.ge.s32.totalorder %s42, 2
      %s44 = scalar_select %p43, 0, %s42
      %s45 = sadd.s32 1, %s36
      %s46 = scalar_select %p43, %s45, %s36
      %p47 = scmp.ge.s32.totalorder %s46, 2
      %s48 = scalar_select %p47, 0, %s46
      %s49 = ssub.s32 %s36, %s48
      %p50 = scmp.eq.s32.totalorder %s49, 0
      %s52 = sadd.s32 %s51, 1
      %s53 = scalar_select %p50, %s51, %s52
      %p56 = pneg %p50
      %p57 = scmp.eq.s32.totalorder %s29, 3
      %p58 = por %p56, %p57
      %p59 = scmp.ne.s32.totalorder %s51, %s54
      %p60 = scmp.eq.s32.totalorder %s29, 0
      %p61 = por %p59, %p60
      %p62 = scmp.ne.s32.totalorder %s51, %s54
      %p63 = scmp.eq.s32.totalorder %s34, 3
      %p64 = por %p62, %p63
      %p65 = scmp.ne.s32.totalorder %s54, %s55
      %p66 = scmp.eq.s32.totalorder %s34, 0
      %p67 = por %p65, %p66
      %p68 = scmp.ne.s32.totalorder %s54, %s55
      %p69 = scmp.eq.s32.totalorder %s35, 3
      %p70 = por %p68, %p69
      %p72 = scmp.ne.s32.totalorder %s55, %s71
      %p73 = scmp.eq.s32.totalorder %s35, 0
      %p74 = por %p72, %p73
      %s76 = sadd.s32 %s75, 1
      %p79 = scmp.eq.s32.totalorder %s29, 3
      %p80 = scmp.ne.s32.totalorder %s75, %s77
      %p81 = scmp.eq.s32.totalorder %s29, 0
      %p82 = por %p80, %p81
      %p83 = scmp.ne.s32.totalorder %s75, %s77
      %p84 = scmp.eq.s32.totalorder %s34, 3
      %p85 = por %p83, %p84
      %p86 = scmp.ne.s32.totalorder %s77, %s78
      %p87 = scmp.eq.s32.totalorder %s34, 0
      %p88 = por %p86, %p87
      %p89 = scmp.ne.s32.totalorder %s77, %s78
      %p90 = scmp.eq.s32.totalorder %s35, 3
      %p91 = por %p89, %p90
      %p93 = scmp.ne.s32.totalorder %s78, %s92
      %p94 = scmp.eq.s32.totalorder %s35, 0
      %p95 = por %p93, %p94
      %s97 = sadd.s32 %s96, 1
      %p100 = scmp.eq.s32.totalorder %s29, 3
      %p101 = scmp.ne.s32.totalorder %s96, %s98
      %p102 = scmp.eq.s32.totalorder %s29, 0
      %p103 = por %p101, %p102
      %p104 = scmp.ne.s32.totalorder %s96, %s98
      %p105 = scmp.eq.s32.totalorder %s34, 3
      %p106 = por %p104, %p105
      %p107 = scmp.ne.s32.totalorder %s98, %s99
      %p108 = scmp.eq.s32.totalorder %s34, 0
      %p109 = por %p107, %p108
      %p110 = scmp.ne.s32.totalorder %s98, %s99
      %p111 = scmp.eq.s32.totalorder %s35, 3
      %p112 = por %p110, %p111
      %p114 = scmp.ne.s32.totalorder %s99, %s113
      %p115 = scmp.eq.s32.totalorder %s35, 0
      %p116 = por %p114, %p115
      %s118 = sadd.s32 %s117, 1
      %p121 = scmp.eq.s32.totalorder %s29, 3
      %p122 = scmp.ne.s32.totalorder %s117, %s119
      %p123 = scmp.eq.s32.totalorder %s29, 0
      %p124 = por %p122, %p123
      %p125 = scmp.ne.s32.totalorder %s117, %s119
      %p126 = scmp.eq.s32.totalorder %s34, 3
      %p127 = por %p125, %p126
      %p128 = scmp.ne.s32.totalorder %s119, %s120
      %p129 = scmp.eq.s32.totalorder %s34, 0
      %p130 = por %p128, %p129
      %p131 = scmp.ne.s32.totalorder %s119, %s120
      %p132 = scmp.eq.s32.totalorder %s35, 3
      %p133 = por %p131, %p132
      %p135 = scmp.ne.s32.totalorder %s120, %s134
      %p136 = scmp.eq.s32.totalorder %s35, 0
      %p137 = por %p135, %p136
      %s138 = ssub.s32 %s37, %s44
      %p139 = scmp.eq.s32.totalorder %s138, 0
      %s141 = sadd.s32 %s140, 1
      %s142 = scalar_select %p139, %s140, %s141
      %p145 = pneg %p139
      %p146 = scmp.eq.s32.totalorder %s29, 3
      %p147 = por %p145, %p146
      %p148 = scmp.ne.s32.totalorder %s140, %s143
      %p149 = scmp.eq.s32.totalorder %s29, 0
      %p150 = por %p148, %p149
      %p151 = scmp.ne.s32.totalorder %s140, %s143
      %p152 = scmp.eq.s32.totalorder %s34, 3
      %p153 = por %p151, %p152
      %p154 = scmp.ne.s32.totalorder %s143, %s144
      %p155 = scmp.eq.s32.totalorder %s34, 0
      %p156 = por %p154, %p155
      %p157 = scmp.ne.s32.totalorder %s143, %s144
      %p158 = scmp.eq.s32.totalorder %s35, 3
      %p159 = por %p157, %p158
      %p161 = scmp.ne.s32.totalorder %s144, %s160
      %p162 = scmp.eq.s32.totalorder %s35, 0
      %p163 = por %p161, %p162
      %s164 = ssub.s32 %s37, %s44
      %p165 = scmp.eq.s32.totalorder %s164, 0
      %s167 = sadd.s32 %s166, 1
      %s168 = scalar_select %p165, %s166, %s167
      %p171 = pneg %p165
      %p172 = scmp.eq.s32.totalorder %s29, 3
      %p173 = por %p171, %p172
      %p174 = scmp.ne.s32.totalorder %s166, %s169
      %p175 = scmp.eq.s32.totalorder %s29, 0
      %p176 = por %p174, %p175
      %p177 = scmp.ne.s32.totalorder %s166, %s169
      %p178 = scmp.eq.s32.totalorder %s34, 3
      %p179 = por %p177, %p178
      %p180 = scmp.ne.s32.totalorder %s169, %s170
      %p181 = scmp.eq.s32.totalorder %s34, 0
      %p182 = por %p180, %p181
      %p183 = scmp.ne.s32.totalorder %s169, %s170
      %p184 = scmp.eq.s32.totalorder %s35, 3
      %p185 = por %p183, %p184
      %p187 = scmp.ne.s32.totalorder %s170, %s186
      %p188 = scmp.eq.s32.totalorder %s35, 0
      %p189 = por %p187, %p188
      %s190 = ssub.s32 %s37, %s44
      %p191 = scmp.eq.s32.totalorder %s190, 0
      %s193 = sadd.s32 %s192, 1
      %s194 = scalar_select %p191, %s192, %s193
      %p197 = pneg %p191
      %p198 = scmp.eq.s32.totalorder %s29, 3
      %p199 = por %p197, %p198
      %p200 = scmp.ne.s32.totalorder %s192, %s195
      %p201 = scmp.eq.s32.totalorder %s29, 0
      %p202 = por %p200, %p201
      %p203 = scmp.ne.s32.totalorder %s192, %s195
      %p204 = scmp.eq.s32.totalorder %s34, 3
      %p205 = por %p203, %p204
      %p206 = scmp.ne.s32.totalorder %s195, %s196
      %p207 = scmp.eq.s32.totalorder %s34, 0
      %p208 = por %p206, %p207
      %p209 = scmp.ne.s32.totalorder %s195, %s196
      %p210 = scmp.eq.s32.totalorder %s35, 3
      %p211 = por %p209, %p210
      %p213 = scmp.ne.s32.totalorder %s196, %s212
      %p214 = scmp.eq.s32.totalorder %s35, 0
      %p215 = por %p213, %p214
      %s216 = ssub.s32 %s37, %s44
      %p217 = scmp.eq.s32.totalorder %s216, 0
      %s219 = sadd.s32 %s218, 1
      %s220 = scalar_select %p217, %s218, %s219
      %p223 = pneg %p217
      %p224 = scmp.eq.s32.totalorder %s29, 3
      %p225 = por %p223, %p224
      %p226 = scmp.ne.s32.totalorder %s218, %s221
      %p227 = scmp.eq.s32.totalorder %s29, 0
      %p228 = por %p226, %p227
      %p229 = scmp.ne.s32.totalorder %s218, %s221
      %p230 = scmp.eq.s32.totalorder %s34, 3
      %p231 = por %p229, %p230
      %p232 = scmp.ne.s32.totalorder %s221, %s222
      %p233 = scmp.eq.s32.totalorder %s34, 0
      %p234 = por %p232, %p233
      %p235 = scmp.ne.s32.totalorder %s221, %s222
      %p236 = scmp.eq.s32.totalorder %s35, 3
      %p237 = por %p235, %p236
      %p239 = scmp.ne.s32.totalorder %s222, %s238
      %p240 = scmp.eq.s32.totalorder %s35, 0
      %p241 = por %p239, %p240
      %s242 = ssub.s32 %s37, %s44
      %p243 = scmp.eq.s32.totalorder %s242, 0
      %s245 = sadd.s32 %s244, 1
      %s246 = scalar_select %p243, %s244, %s245
      %p249 = pneg %p243
      %p250 = scmp.eq.s32.totalorder %s29, 3
      %p251 = por %p249, %p250
      %p252 = scmp.ne.s32.totalorder %s244, %s247
      %p253 = scmp.eq.s32.totalorder %s29, 0
      %p254 = por %p252, %p253
      %p255 = scmp.ne.s32.totalorder %s244, %s247
      %p256 = scmp.eq.s32.totalorder %s34, 3
      %p257 = por %p255, %p256
      %p258 = scmp.ne.s32.totalorder %s247, %s248
      %p259 = scmp.eq.s32.totalorder %s34, 0
      %p260 = por %p258, %p259
      %p261 = scmp.ne.s32.totalorder %s247, %s248
      %p262 = scmp.eq.s32.totalorder %s35, 3
      %p263 = por %p261, %p262
      %p265 = scmp.ne.s32.totalorder %s248, %s264
      %p266 = scmp.eq.s32.totalorder %s35, 0
      %p267 = por %p265, %p266
      %s268 = ssub.s32 %s37, %s44
      %p269 = scmp.eq.s32.totalorder %s268, 0
      %s271 = sadd.s32 %s270, 1
      %s272 = scalar_select %p269, %s270, %s271
      %p275 = pneg %p269
      %p276 = scmp.eq.s32.totalorder %s29, 3
      %p277 = por %p275, %p276
      %p278 = scmp.ne.s32.totalorder %s270, %s273
      %p279 = scmp.eq.s32.totalorder %s29, 0
      %p280 = por %p278, %p279
      %p281 = scmp.ne.s32.totalorder %s270, %s273
      %p282 = scmp.eq.s32.totalorder %s34, 3
      %p283 = por %p281, %p282
      %p284 = scmp.ne.s32.totalorder %s273, %s274
      %p285 = scmp.eq.s32.totalorder %s34, 0
      %p286 = por %p284, %p285
      %p287 = scmp.ne.s32.totalorder %s273, %s274
      %p288 = scmp.eq.s32.totalorder %s35, 3
      %p289 = por %p287, %p288
      %p291 = scmp.ne.s32.totalorder %s274, %s290
      %p292 = scmp.eq.s32.totalorder %s35, 0
      %p293 = por %p291, %p292
      %s294 = ssub.s32 %s37, %s44
      %p295 = scmp.eq.s32.totalorder %s294, 0
      %s297 = sadd.s32 %s296, 1
      %s298 = scalar_select %p295, %s296, %s297
      %p301 = pneg %p295
      %p302 = scmp.eq.s32.totalorder %s29, 3
      %p303 = por %p301, %p302
      %p304 = scmp.ne.s32.totalorder %s296, %s299
      %p305 = scmp.eq.s32.totalorder %s29, 0
      %p306 = por %p304, %p305
      %p307 = scmp.ne.s32.totalorder %s296, %s299
      %p308 = scmp.eq.s32.totalorder %s34, 3
      %p309 = por %p307, %p308
      %p310 = scmp.ne.s32.totalorder %s299, %s300
      %p311 = scmp.eq.s32.totalorder %s34, 0
      %p312 = por %p310, %p311
      %p313 = scmp.ne.s32.totalorder %s299, %s300
      %p314 = scmp.eq.s32.totalorder %s35, 3
      %p315 = por %p313, %p314
      %p317 = scmp.ne.s32.totalorder %s300, %s316
      %p318 = scmp.eq.s32.totalorder %s35, 0
      %p319 = por %p317, %p318
      %s320 = ssub.s32 %s37, %s44
      %p321 = scmp.eq.s32.totalorder %s320, 0
      %s323 = sadd.s32 %s322, 1
      %s324 = scalar_select %p321, %s322, %s323
      %p327 = pneg %p321
      %p328 = scmp.eq.s32.totalorder %s29, 3
      %p329 = por %p327, %p328
      %p330 = scmp.ne.s32.totalorder %s322, %s325
      %p331 = scmp.eq.s32.totalorder %s29, 0
      %p332 = por %p330, %p331
      %p333 = scmp.ne.s32.totalorder %s322, %s325
      %p334 = scmp.eq.s32.totalorder %s34, 3
      %p335 = por %p333, %p334
      %p336 = scmp.ne.s32.totalorder %s325, %s326
      %p337 = scmp.eq.s32.totalorder %s34, 0
      %p338 = por %p336, %p337
      %p339 = scmp.ne.s32.totalorder %s325, %s326
      %p340 = scmp.eq.s32.totalorder %s35, 3
      %p341 = por %p339, %p340
      %p343 = scmp.ne.s32.totalorder %s326, %s342
      %p344 = scmp.eq.s32.totalorder %s35, 0
      %p345 = por %p343, %p344
      %s346 = ssub.s32 %s37, %s44
      %p347 = scmp.eq.s32.totalorder %s346, 0
      %s349 = sadd.s32 %s348, 1
      %s350 = scalar_select %p347, %s348, %s349
      %p353 = pneg %p347
      %p354 = scmp.eq.s32.totalorder %s29, 3
      %p355 = por %p353, %p354
      %p356 = scmp.ne.s32.totalorder %s348, %s351
      %p357 = scmp.eq.s32.totalorder %s29, 0
      %p358 = por %p356, %p357
      %p359 = scmp.ne.s32.totalorder %s348, %s351
      %p360 = scmp.eq.s32.totalorder %s34, 3
      %p361 = por %p359, %p360
      %p362 = scmp.ne.s32.totalorder %s351, %s352
      %p363 = scmp.eq.s32.totalorder %s34, 0
      %p364 = por %p362, %p363
      %p365 = scmp.ne.s32.totalorder %s351, %s352
      %p366 = scmp.eq.s32.totalorder %s35, 3
      %p367 = por %p365, %p366
      %p369 = scmp.ne.s32.totalorder %s352, %s368
      %p370 = scmp.eq.s32.totalorder %s35, 0
      %p371 = por %p369, %p370
      %s372 = ssub.s32 %s37, %s44
      %p373 = scmp.eq.s32.totalorder %s372, 0
      %s375 = sadd.s32 %s374, 1
      %s376 = scalar_select %p373, %s374, %s375
      %p379 = pneg %p373
      %p380 = scmp.eq.s32.totalorder %s29, 3
      %p381 = por %p379, %p380
      %p382 = scmp.ne.s32.totalorder %s374, %s377
      %p383 = scmp.eq.s32.totalorder %s29, 0
      %p384 = por %p382, %p383
      %p385 = scmp.ne.s32.totalorder %s374, %s377
      %p386 = scmp.eq.s32.totalorder %s34, 3
      %p387 = por %p385, %p386
      %p388 = scmp.ne.s32.totalorder %s377, %s378
      %p389 = scmp.eq.s32.totalorder %s34, 0
      %p390 = por %p388, %p389
      %p391 = scmp.ne.s32.totalorder %s377, %s378
      %p392 = scmp.eq.s32.totalorder %s35, 3
      %p393 = por %p391, %p392
      %p395 = scmp.ne.s32.totalorder %s378, %s394
      %p396 = scmp.eq.s32.totalorder %s35, 0
      %p397 = por %p395, %p396
      %s398 = ssub.s32 %s37, %s44
      %p399 = scmp.eq.s32.totalorder %s398, 0
      %s401 = sadd.s32 %s400, 1
      %s402 = scalar_select %p399, %s400, %s401
      %p405 = pneg %p399
      %p406 = scmp.eq.s32.totalorder %s29, 3
      %p407 = por %p405, %p406
      %p408 = scmp.ne.s32.totalorder %s400, %s403
      %p409 = scmp.eq.s32.totalorder %s29, 0
      %p410 = por %p408, %p409
      %p411 = scmp.ne.s32.totalorder %s400, %s403
      %p412 = scmp.eq.s32.totalorder %s34, 3
      %p413 = por %p411, %p412
      %p414 = scmp.ne.s32.totalorder %s403, %s404
      %p415 = scmp.eq.s32.totalorder %s34, 0
      %p416 = por %p414, %p415
      %p417 = scmp.ne.s32.totalorder %s403, %s404
      %p418 = scmp.eq.s32.totalorder %s35, 3
      %p419 = por %p417, %p418
      %p421 = scmp.ne.s32.totalorder %s404, %s420
      %p422 = scmp.eq.s32.totalorder %s35, 0
      %p423 = por %p421, %p422
      %s424 = ssub.s32 %s37, %s44
      %p425 = scmp.eq.s32.totalorder %s424, 0
      %s427 = sadd.s32 %s426, 1
      %s428 = scalar_select %p425, %s426, %s427
      %p431 = pneg %p425
      %p432 = scmp.eq.s32.totalorder %s29, 3
      %p433 = por %p431, %p432
      %p434 = scmp.ne.s32.totalorder %s426, %s429
      %p435 = scmp.eq.s32.totalorder %s29, 0
      %p436 = por %p434, %p435
      %p437 = scmp.ne.s32.totalorder %s426, %s429
      %p438 = scmp.eq.s32.totalorder %s34, 3
      %p439 = por %p437, %p438
      %p440 = scmp.ne.s32.totalorder %s429, %s430
      %p441 = scmp.eq.s32.totalorder %s34, 0
      %p442 = por %p440, %p441
      %p443 = scmp.ne.s32.totalorder %s429, %s430
      %p444 = scmp.eq.s32.totalorder %s35, 3
      %p445 = por %p443, %p444
      %p447 = scmp.ne.s32.totalorder %s430, %s446
      %p448 = scmp.eq.s32.totalorder %s35, 0
      %p449 = por %p447, %p448
      %s450 = ssub.s32 %s37, %s44
      %p451 = scmp.eq.s32.totalorder %s450, 0
      %s453 = sadd.s32 %s452, 1
      %s454 = scalar_select %p451, %s452, %s453
      %p457 = pneg %p451
      %p458 = scmp.eq.s32.totalorder %s29, 3
      %p459 = por %p457, %p458
      %p460 = scmp.ne.s32.totalorder %s452, %s455
      %p461 = scmp.eq.s32.totalorder %s29, 0
      %p462 = por %p460, %p461
      %p463 = scmp.ne.s32.totalorder %s452, %s455
      %p464 = scmp.eq.s32.totalorder %s34, 3
      %p465 = por %p463, %p464
      %p466 = scmp.ne.s32.totalorder %s455, %s456
      %p467 = scmp.eq.s32.totalorder %s34, 0
      %p468 = por %p466, %p467
      %p469 = scmp.ne.s32.totalorder %s455, %s456
      %p470 = scmp.eq.s32.totalorder %s35, 3
      %p471 = por %p469, %p470
      %p473 = scmp.ne.s32.totalorder %s456, %s472
      %p474 = scmp.eq.s32.totalorder %s35, 0
      %p475 = por %p473, %p474
      %s476 = ssub.s32 %s37, %s44
      %p477 = scmp.eq.s32.totalorder %s476, 0
      %s479 = sadd.s32 %s478, 1
      %s480 = scalar_select %p477, %s478, %s479
      %p483 = pneg %p477
      %p484 = scmp.eq.s32.totalorder %s29, 3
      %p485 = por %p483, %p484
      %p486 = scmp.ne.s32.totalorder %s478, %s481
      %p487 = scmp.eq.s32.totalorder %s29, 0
      %p488 = por %p486, %p487
      %p489 = scmp.ne.s32.totalorder %s478, %s481
      %p490 = scmp.eq.s32.totalorder %s34, 3
      %p491 = por %p489, %p490
      %p492 = scmp.ne.s32.totalorder %s481, %s482
      %p493 = scmp.eq.s32.totalorder %s34, 0
      %p494 = por %p492, %p493
      %p495 = scmp.ne.s32.totalorder %s481, %s482
      %p496 = scmp.eq.s32.totalorder %s35, 3
      %p497 = por %p495, %p496
      %p499 = scmp.ne.s32.totalorder %s482, %s498
      %p500 = scmp.eq.s32.totalorder %s35, 0
      %p501 = por %p499, %p500
      %s503 = sadd.s32 %s502, 1
      %p506 = scmp.eq.s32.totalorder %s29, 3
      %p507 = scmp.ne.s32.totalorder %s502, %s504
      %p508 = scmp.eq.s32.totalorder %s29, 0
      %p509 = por %p507, %p508
      %p510 = scmp.ne.s32.totalorder %s502, %s504
      %p511 = scmp.eq.s32.totalorder %s34, 3
      %p512 = por %p510, %p511
      %p513 = scmp.ne.s32.totalorder %s504, %s505
      %p514 = scmp.eq.s32.totalorder %s34, 0
      %p515 = por %p513, %p514
      %p516 = scmp.ne.s32.totalorder %s504, %s505
      %p517 = scmp.eq.s32.totalorder %s35, 3
      %p518 = por %p516, %p517
      %p520 = scmp.ne.s32.totalorder %s505, %s519
      %p521 = scmp.eq.s32.totalorder %s35, 0
      %p522 = por %p520, %p521
      %s524 = sadd.s32 %s523, 1
      %p527 = scmp.eq.s32.totalorder %s29, 3
      %p528 = scmp.ne.s32.totalorder %s523, %s525
      %p529 = scmp.eq.s32.totalorder %s29, 0
      %p530 = por %p528, %p529
      %p531 = scmp.ne.s32.totalorder %s523, %s525
      %p532 = scmp.eq.s32.totalorder %s34, 3
      %p533 = por %p531, %p532
      %p534 = scmp.ne.s32.totalorder %s525, %s526
      %p535 = scmp.eq.s32.totalorder %s34, 0
      %p536 = por %p534, %p535
      %p537 = scmp.ne.s32.totalorder %s525, %s526
      %p538 = scmp.eq.s32.totalorder %s35, 3
      %p539 = por %p537, %p538
      %p541 = scmp.ne.s32.totalorder %s526, %s540
      %p542 = scmp.eq.s32.totalorder %s35, 0
      %p543 = por %p541, %p542
      %s544 = ssub.s32 %s36, %s48
      %p545 = scmp.eq.s32.totalorder %s544, 0
      %s547 = sadd.s32 %s546, 1
      %s548 = scalar_select %p545, %s546, %s547
      %p551 = pneg %p545
      %p552 = scmp.eq.s32.totalorder %s29, 3
      %p553 = por %p551, %p552
      %p554 = scmp.ne.s32.totalorder %s546, %s549
      %p555 = scmp.eq.s32.totalorder %s29, 0
      %p556 = por %p554, %p555
      %p557 = scmp.ne.s32.totalorder %s546, %s549
      %p558 = scmp.eq.s32.totalorder %s34, 3
      %p559 = por %p557, %p558
      %p560 = scmp.ne.s32.totalorder %s549, %s550
      %p561 = scmp.eq.s32.totalorder %s34, 0
      %p562 = por %p560, %p561
      %p563 = scmp.ne.s32.totalorder %s549, %s550
      %p564 = scmp.eq.s32.totalorder %s35, 3
      %p565 = por %p563, %p564
      %p567 = scmp.ne.s32.totalorder %s550, %s566
      %p568 = scmp.eq.s32.totalorder %s35, 0
      %p569 = por %p567, %p568
      %p570 = scmp.le.s32.totalorder 1, %s29
      %p571 = scmp.lt.s32.totalorder %s29, 5
      %p572 = pnand %p570, %p571
      %p573 = pneg %p572
      // Predicated region
      $region9: #{pfa_forward.1} parent=5 // pred_check
        _
      $region10: #{pfa_forward.1} parent=5 // pred_check_branch
        %575 = sbr.rel (%p572) target = $region12
      $region11: #{pfa_forward.1} parent=5 // pred_region
        %s576 = ssub.s32 %s29, 1
        // Predicated region
        $region13: #{pfa_forward.1} parent=11 // pred_check
          %p577 = pneg %p88
        $region14: #{pfa_forward.1} parent=11 // pred_check_branch
          %579 = sbr.rel (%p577) target = $region16
        $region15: #{pfa_forward.1} parent=11 // pred_region
          _
        $region16: #{pfa_forward.1} parent=11 // pred_fallthru
          _
        // Predicated region
        $region17: #{pfa_forward.1} parent=11 // pred_check
          %p580 = pneg %p109
        $region18: #{pfa_forward.1} parent=11 // pred_check_branch
          %582 = sbr.rel (%p580) target = $region20
        $region19: #{pfa_forward.1} parent=11 // pred_region
          _
        $region20: #{pfa_forward.1} parent=11 // pred_fallthru
          _
        // Predicated region
        $region21: #{pfa_forward.1} parent=11 // pred_check
          %p583 = pneg %p130
        $region22: #{pfa_forward.1} parent=11 // pred_check_branch
          %585 = sbr.rel (%p583) target = $region24
        $region23: #{pfa_forward.1} parent=11 // pred_region
          _
        $region24: #{pfa_forward.1} parent=11 // pred_fallthru
          _
        // Predicated region
        $region25: #{pfa_forward.1} parent=11 // pred_check
          %p586 = pneg %p515
        $region26: #{pfa_forward.1} parent=11 // pred_check_branch
          %588 = sbr.rel (%p586) target = $region28
        $region27: #{pfa_forward.1} parent=11 // pred_region
          _
        $region28: #{pfa_forward.1} parent=11 // pred_fallthru
          _
        // Predicated region
        $region29: #{pfa_forward.1} parent=11 // pred_check
          %p589 = pneg %p536
        $region30: #{pfa_forward.1} parent=11 // pred_check_branch
          %591 = sbr.rel (%p589) target = $region32
        $region31: #{pfa_forward.1} parent=11 // pred_region
          _
        $region32: #{pfa_forward.1} parent=11 // pred_fallthru
          _
      $region12: #{pfa_forward.1} parent=5 // pred_fallthru
        _
      %p592 = scmp.lt.s32.totalorder %s29, 4
      // Predicated region
      $region33: #{pfa_forward.1} parent=5 // pred_check
        %p593 = pneg %p592
      $region34: #{pfa_forward.1} parent=5 // pred_check_branch
        %595 = sbr.rel (%p593) target = $region36
      $region35: #{pfa_forward.1} parent=5 // pred_region
        // Predicated region
        $region37: #{pfa_forward.1} parent=35 // pred_check
          %p596 = pneg %p61
        $region38: #{pfa_forward.1} parent=35 // pred_check_branch
          %598 = sbr.rel (%p596) target = $region40
        $region39: #{pfa_forward.1} parent=35 // pred_region
          %s599 = smul.u32 2, %s36
          %p600 = scmp.lt.s32.totalorder %s599, 3
          %s601 = scalar_select %p600, %s599, 3
          %s602 = smul.addr %s601, 8
          %s603 = scalar_lea.vmem %s0, %s602
          %s604 = smul.u32 2, %s36
        $region40: #{pfa_forward.1} parent=35 // pred_fallthru
          _
        // Predicated region
        $region41: #{pfa_forward.1} parent=35 // pred_check
          %p605 = pneg %p150
        $region42: #{pfa_forward.1} parent=35 // pred_check_branch
          %607 = sbr.rel (%p605) target = $region44
        $region43: #{pfa_forward.1} parent=35 // pred_region
          %p608 = scmp.lt.s32.totalorder %s37, 1
          %s609 = scalar_select %p608, %s37, 1
          %s610 = scalar_lea.vmem %s4, %s609
        $region44: #{pfa_forward.1} parent=35 // pred_fallthru
          _
        // Predicated region
        $region45: #{pfa_forward.1} parent=35 // pred_check
          %p611 = pneg %p176
        $region46: #{pfa_forward.1} parent=35 // pred_check_branch
          %613 = sbr.rel (%p611) target = $region48
        $region47: #{pfa_forward.1} parent=35 // pred_region
          %p614 = scmp.lt.s32.totalorder %s37, 1
          %s615 = scalar_select %p614, %s37, 1
          %s616 = scalar_lea.vmem %s5, %s615
        $region48: #{pfa_forward.1} parent=35 // pred_fallthru
          _
        // Predicated region
        $region49: #{pfa_forward.1} parent=35 // pred_check
          %p617 = pneg %p202
        $region50: #{pfa_forward.1} parent=35 // pred_check_branch
          %619 = sbr.rel (%p617) target = $region52
        $region51: #{pfa_forward.1} parent=35 // pred_region
          %p620 = scmp.lt.s32.totalorder %s37, 1
          %s621 = scalar_select %p620, %s37, 1
          %s622 = smul.addr %s621, 4
          %s623 = smul.addr %s622, 4
          %s624 = scalar_lea.vmem %s6, %s623
        $region52: #{pfa_forward.1} parent=35 // pred_fallthru
          _
        // Predicated region
        $region53: #{pfa_forward.1} parent=35 // pred_check
          %p625 = pneg %p228
        $region54: #{pfa_forward.1} parent=35 // pred_check_branch
          %627 = sbr.rel (%p625) target = $region56
        $region55: #{pfa_forward.1} parent=35 // pred_region
          %p628 = scmp.lt.s32.totalorder %s37, 1
          %s629 = scalar_select %p628, %s37, 1
          %s630 = scalar_lea.vmem %s7, %s629
        $region56: #{pfa_forward.1} parent=35 // pred_fallthru
          _
        // Predicated region
        $region57: #{pfa_forward.1} parent=35 // pred_check
          %p631 = pneg %p254
        $region58: #{pfa_forward.1} parent=35 // pred_check_branch
          %633 = sbr.rel (%p631) target = $region60
        $region59: #{pfa_forward.1} parent=35 // pred_region
          %p634 = scmp.lt.s32.totalorder %s37, 1
          %s635 = scalar_select %p634, %s37, 1
          %s636 = smul.addr %s635, 4
          %s637 = smul.addr %s636, 4
          %s638 = scalar_lea.vmem %s8, %s637
        $region60: #{pfa_forward.1} parent=35 // pred_fallthru
          _
        // Predicated region
        $region61: #{pfa_forward.1} parent=35 // pred_check
          %p639 = pneg %p280
        $region62: #{pfa_forward.1} parent=35 // pred_check_branch
          %641 = sbr.rel (%p639) target = $region64
        $region63: #{pfa_forward.1} parent=35 // pred_region
          %p642 = scmp.lt.s32.totalorder %s37, 1
          %s643 = scalar_select %p642, %s37, 1
          %s644 = smul.addr %s643, 2
          %s645 = smul.addr %s644, 4
          %s646 = scalar_lea.vmem %s9, %s645
        $region64: #{pfa_forward.1} parent=35 // pred_fallthru
          _
        // Predicated region
        $region65: #{pfa_forward.1} parent=35 // pred_check
          %p647 = pneg %p306
        $region66: #{pfa_forward.1} parent=35 // pred_check_branch
          %649 = sbr.rel (%p647) target = $region68
        $region67: #{pfa_forward.1} parent=35 // pred_region
          %p650 = scmp.lt.s32.totalorder %s37, 1
          %s651 = scalar_select %p650, %s37, 1
          %s652 = smul.addr %s651, 4
          %s653 = smul.addr %s652, 4
          %s654 = scalar_lea.vmem %s10, %s653
        $region68: #{pfa_forward.1} parent=35 // pred_fallthru
          _
        // Predicated region
        $region69: #{pfa_forward.1} parent=35 // pred_check
          %p655 = pneg %p332
        $region70: #{pfa_forward.1} parent=35 // pred_check_branch
          %657 = sbr.rel (%p655) target = $region72
        $region71: #{pfa_forward.1} parent=35 // pred_region
          %p658 = scmp.lt.s32.totalorder %s37, 1
          %s659 = scalar_select %p658, %s37, 1
          %s660 = scalar_lea.vmem %s11, %s659
        $region72: #{pfa_forward.1} parent=35 // pred_fallthru
          _
        // Predicated region
        $region73: #{pfa_forward.1} parent=35 // pred_check
          %p661 = pneg %p358
        $region74: #{pfa_forward.1} parent=35 // pred_check_branch
          %663 = sbr.rel (%p661) target = $region76
        $region75: #{pfa_forward.1} parent=35 // pred_region
          %p664 = scmp.lt.s32.totalorder %s37, 1
          %s665 = scalar_select %p664, %s37, 1
          %s666 = scalar_lea.vmem %s12, %s665
        $region76: #{pfa_forward.1} parent=35 // pred_fallthru
          _
        // Predicated region
        $region77: #{pfa_forward.1} parent=35 // pred_check
          %p667 = pneg %p384
        $region78: #{pfa_forward.1} parent=35 // pred_check_branch
          %669 = sbr.rel (%p667) target = $region80
        $region79: #{pfa_forward.1} parent=35 // pred_region
          %p670 = scmp.lt.s32.totalorder %s37, 1
          %s671 = scalar_select %p670, %s37, 1
          %s672 = scalar_lea.vmem %s13, %s671
        $region80: #{pfa_forward.1} parent=35 // pred_fallthru
          _
        // Predicated region
        $region81: #{pfa_forward.1} parent=35 // pred_check
          %p673 = pneg %p410
        $region82: #{pfa_forward.1} parent=35 // pred_check_branch
          %675 = sbr.rel (%p673) target = $region84
        $region83: #{pfa_forward.1} parent=35 // pred_region
          %p676 = scmp.lt.s32.totalorder %s37, 1
          %s677 = scalar_select %p676, %s37, 1
          %s678 = smul.addr %s677, 4
          %s679 = smul.addr %s678, 4
          %s680 = scalar_lea.vmem %s14, %s679
        $region84: #{pfa_forward.1} parent=35 // pred_fallthru
          _
        // Predicated region
        $region85: #{pfa_forward.1} parent=35 // pred_check
          %p681 = pneg %p436
        $region86: #{pfa_forward.1} parent=35 // pred_check_branch
          %683 = sbr.rel (%p681) target = $region88
        $region87: #{pfa_forward.1} parent=35 // pred_region
          %p684 = scmp.lt.s32.totalorder %s37, 1
          %s685 = scalar_select %p684, %s37, 1
          %s686 = scalar_lea.vmem %s15, %s685
        $region88: #{pfa_forward.1} parent=35 // pred_fallthru
          _
        // Predicated region
        $region89: #{pfa_forward.1} parent=35 // pred_check
          %p687 = pneg %p462
        $region90: #{pfa_forward.1} parent=35 // pred_check_branch
          %689 = sbr.rel (%p687) target = $region92
        $region91: #{pfa_forward.1} parent=35 // pred_region
          %p690 = scmp.lt.s32.totalorder %s37, 1
          %s691 = scalar_select %p690, %s37, 1
          %s692 = smul.addr %s691, 16
          %s693 = smul.addr %s692, 4
          %s694 = scalar_lea.vmem %s16, %s693
        $region92: #{pfa_forward.1} parent=35 // pred_fallthru
          _
        // Predicated region
        $region93: #{pfa_forward.1} parent=35 // pred_check
          %p695 = pneg %p488
        $region94: #{pfa_forward.1} parent=35 // pred_check_branch
          %697 = sbr.rel (%p695) target = $region96
        $region95: #{pfa_forward.1} parent=35 // pred_region
          %p698 = scmp.lt.s32.totalorder %s37, 1
          %s699 = scalar_select %p698, %s37, 1
          %s700 = scalar_lea.vmem %s17, %s699
        $region96: #{pfa_forward.1} parent=35 // pred_fallthru
          _
      $region36: #{pfa_forward.1} parent=5 // pred_fallthru
        _
      %p701 = scmp.le.s32.totalorder 1, %s29
      %p702 = scmp.lt.s32.totalorder %s29, 5
      %p703 = pnand %p701, %p702
      %p704 = pneg %p703
      // Predicated region
      $region97: #{pfa_forward.1} parent=5 // pred_check
        _
      $region98: #{pfa_forward.1} parent=5 // pred_check_branch
        %706 = sbr.rel (%p703) target = $region100
      $region99: #{pfa_forward.1} parent=5 // pred_region
        %s707 = ssub.s32 %s29, 1
        %s708 = smul.u32 2, %s38
        %p709 = scmp.lt.s32.totalorder %s708, 3
        %s710 = scalar_select %p709, %s708, 3
        %s711 = smul.addr %s710, 8
        %s712 = scalar_lea.vmem %s0, %s711
        %p713 = pneg %p67
        %p714 = pneg %p64
        %p715 = pneg %p88
        %p716 = pneg %p85
        %p717 = pneg %p109
        %p718 = pneg %p106
        %p719 = pneg %p130
        %p720 = pneg %p127
        %p721 = scmp.lt.s32.totalorder %s39, 1
        %s722 = scalar_select %p721, %s39, 1
        %s723 = scalar_lea.vmem %s4, %s722
        %p724 = pneg %p156
        %p725 = pneg %p153
        %p726 = scmp.lt.s32.totalorder %s39, 1
        %s727 = scalar_select %p726, %s39, 1
        %s728 = scalar_lea.vmem %s5, %s727
        %p729 = pneg %p182
        %p730 = pneg %p179
        %p731 = scmp.lt.s32.totalorder %s39, 1
        %s732 = scalar_select %p731, %s39, 1
        %s733 = smul.addr %s732, 4
        %s734 = smul.addr %s733, 4
        %s735 = scalar_lea.vmem %s6, %s734
        %p736 = pneg %p208
        %p737 = pneg %p205
        %p738 = scmp.lt.s32.totalorder %s39, 1
        %s739 = scalar_select %p738, %s39, 1
        %s740 = scalar_lea.vmem %s7, %s739
        %p741 = pneg %p234
        %p742 = pneg %p231
        %p743 = scmp.lt.s32.totalorder %s39, 1
        %s744 = scalar_select %p743, %s39, 1
        %s745 = smul.addr %s744, 4
        %s746 = smul.addr %s745, 4
        %s747 = scalar_lea.vmem %s8, %s746
        %p748 = pneg %p260
        %p749 = pneg %p257
        %p750 = scmp.lt.s32.totalorder %s39, 1
        %s751 = scalar_select %p750, %s39, 1
        %s752 = smul.addr %s751, 2
        %s753 = smul.addr %s752, 4
        %s754 = scalar_lea.vmem %s9, %s753
        %p755 = pneg %p286
        %p756 = pneg %p283
        %p757 = scmp.lt.s32.totalorder %s39, 1
        %s758 = scalar_select %p757, %s39, 1
        %s759 = smul.addr %s758, 4
        %s760 = smul.addr %s759, 4
        %s761 = scalar_lea.vmem %s10, %s760
        %p762 = pneg %p312
        %p763 = pneg %p309
        %p764 = scmp.lt.s32.totalorder %s39, 1
        %s765 = scalar_select %p764, %s39, 1
        %s766 = scalar_lea.vmem %s11, %s765
        %p767 = pneg %p338
        %p768 = pneg %p335
        %p769 = scmp.lt.s32.totalorder %s39, 1
        %s770 = scalar_select %p769, %s39, 1
        %s771 = scalar_lea.vmem %s12, %s770
        %p772 = pneg %p364
        %p773 = pneg %p361
        %p774 = scmp.lt.s32.totalorder %s39, 1
        %s775 = scalar_select %p774, %s39, 1
        %s776 = scalar_lea.vmem %s13, %s775
        %p777 = pneg %p390
        %p778 = pneg %p387
        %p779 = scmp.lt.s32.totalorder %s39, 1
        %s780 = scalar_select %p779, %s39, 1
        %s781 = smul.addr %s780, 4
        %s782 = smul.addr %s781, 4
        %s783 = scalar_lea.vmem %s14, %s782
        %p784 = pneg %p416
        %p785 = pneg %p413
        %p786 = scmp.lt.s32.totalorder %s39, 1
        %s787 = scalar_select %p786, %s39, 1
        %s788 = scalar_lea.vmem %s15, %s787
        %p789 = pneg %p442
        %p790 = pneg %p439
        %p791 = scmp.lt.s32.totalorder %s39, 1
        %s792 = scalar_select %p791, %s39, 1
        %s793 = smul.addr %s792, 16
        %s794 = smul.addr %s793, 4
        %s795 = scalar_lea.vmem %s16, %s794
        %p796 = pneg %p468
        %p797 = pneg %p465
        %p798 = scmp.lt.s32.totalorder %s39, 1
        %s799 = scalar_select %p798, %s39, 1
        %s800 = scalar_lea.vmem %s17, %s799
        %p801 = pneg %p494
        %p802 = pneg %p491
        %p803 = pneg %p515
        %p804 = pneg %p512
        %p805 = pneg %p536
        %p806 = pneg %p533
        %p807 = pneg %p562
        %p808 = pneg %p559
        %s809 = sand.u32 %s549, 1
        %s810 = scalar_lea.sflag [#allocation4], %s809
        %s811 = sand.u32 %s549, 1
        %s812 = smul.addr %s811, 16
        %s813 = scalar_lea.vmem [#allocation3], %s812
        %s814 = smul.u32 2, %s38
        %p815 = scmp.lt.s32.totalorder %s814, 3
        %s816 = scalar_select %p815, %s814, 3
        %s817 = smul.addr %s816, 8
        %s818 = scalar_lea.vmem %s0, %s817
        %s819 = smul.u32 2, %s38
        %p820 = scmp.lt.s32.totalorder %s39, 1
        %s821 = scalar_select %p820, %s39, 1
        %s822 = scalar_lea.vmem %s4, %s821
        %p823 = scmp.lt.s32.totalorder %s39, 1
        %s824 = scalar_select %p823, %s39, 1
        %s825 = scalar_lea.vmem %s5, %s824
        %p826 = scmp.lt.s32.totalorder %s39, 1
        %s827 = scalar_select %p826, %s39, 1
        %s828 = smul.addr %s827, 4
        %s829 = smul.addr %s828, 4
        %s830 = scalar_lea.vmem %s6, %s829
        %p831 = scmp.lt.s32.totalorder %s39, 1
        %s832 = scalar_select %p831, %s39, 1
        %s833 = scalar_lea.vmem %s7, %s832
        %p834 = scmp.lt.s32.totalorder %s39, 1
        %s835 = scalar_select %p834, %s39, 1
        %s836 = smul.addr %s835, 4
        %s837 = smul.addr %s836, 4
        %s838 = scalar_lea.vmem %s8, %s837
        %p839 = scmp.lt.s32.totalorder %s39, 1
        %s840 = scalar_select %p839, %s39, 1
        %s841 = smul.addr %s840, 2
        %s842 = smul.addr %s841, 4
        %s843 = scalar_lea.vmem %s9, %s842
        %p844 = scmp.lt.s32.totalorder %s39, 1
        %s845 = scalar_select %p844, %s39, 1
        %s846 = smul.addr %s845, 4
        %s847 = smul.addr %s846, 4
        %s848 = scalar_lea.vmem %s10, %s847
        %p849 = scmp.lt.s32.totalorder %s39, 1
        %s850 = scalar_select %p849, %s39, 1
        %s851 = scalar_lea.vmem %s11, %s850
        %p852 = scmp.lt.s32.totalorder %s39, 1
        %s853 = scalar_select %p852, %s39, 1
        %s854 = scalar_lea.vmem %s12, %s853
        %p855 = scmp.lt.s32.totalorder %s39, 1
        %s856 = scalar_select %p855, %s39, 1
        %s857 = scalar_lea.vmem %s13, %s856
        %p858 = scmp.lt.s32.totalorder %s39, 1
        %s859 = scalar_select %p858, %s39, 1
        %s860 = smul.addr %s859, 4
        %s861 = smul.addr %s860, 4
        %s862 = scalar_lea.vmem %s14, %s861
        %p863 = scmp.lt.s32.totalorder %s39, 1
        %s864 = scalar_select %p863, %s39, 1
        %s865 = scalar_lea.vmem %s15, %s864
        %p866 = scmp.lt.s32.totalorder %s39, 1
        %s867 = scalar_select %p866, %s39, 1
        %s868 = smul.addr %s867, 16
        %s869 = smul.addr %s868, 4
        %s870 = scalar_lea.vmem %s16, %s869
        %p871 = scmp.lt.s32.totalorder %s39, 1
        %s872 = scalar_select %p871, %s39, 1
        %s873 = scalar_lea.vmem %s17, %s872
        %s874 = smul.u32 2, %s38
        %p876 = scmp.eq.s32.totalorder %s39, 0
        // Predicated region
        $region101: #{pfa_forward.1} parent=99 // pred_check
          %p877 = pneg %p876
        $region102: #{pfa_forward.1} parent=99 // pred_check_branch
          %879 = sbr.rel (%p877) target = $region104
        $region103: #{pfa_forward.1} parent=99 // pred_region
          %v880 = vld [vmem:[%s818] sm:$0xff]
          %v881 = vld [vmem:[%s818 + $0x8] sm:$0xff]
          %v882 = vld [vmem:[%s1] sm:$0xff]
          %v883 = vadd.f32 %v880, %v882
          %v884 = vadd.f32 %v881, %v882
          %vm885 = vcmask 261120
          %886 = vst.msk [vmem:[#allocation2] sm:$0xff] %vm885, %v883
          %887 = vst.msk [vmem:[#allocation2 + $0x8] sm:$0xff] %vm885, %v884
        $region104: #{pfa_forward.1} parent=99 // pred_fallthru
          _
        %v888 = vld [vmem:[#allocation2] sm:$0xff]
        %v889 = vld [vmem:[#allocation2 + $0x8] sm:$0xff]
        %v890 = vld [vmem:[%s2] sm:$0xff]
        %v891 = vld [vmem:[%s2 + $0x8] sm:$0xff]
        %v892 = vld [vmem:[%s2 + $0x10] sm:$0xff]
        %v893 = vld [vmem:[%s2 + $0x18] sm:$0xff]
        %v894 = vld [vmem:[%s3] sm:$0xff]
        %v895 = vld [vmem:[%s3 + $0x8] sm:$0xff]
        %v896 = vld [vmem:[%s3 + $0x10] sm:$0xff]
        %v897 = vld [vmem:[%s3 + $0x18] sm:$0xff]
        %v898 = vld [vmem:[%s822] sm:$0x1]
        %v899 = vld [vmem:[%s825] sm:$0x1]
        %vm900 = vcmask 261120
        %v901 = vsel %vm900, %v888, 0.0
        %902 = vadd.xlane.f32.xlu0 %v901
        %v903 = vpop.xlane.xlu0 %902
        %v904 = vsel %vm900, %v889, 0.0
        %905 = vadd.xlane.f32.xlu0 %v904
        %v906 = vpop.xlane.xlu0 %905
        %v907 = vrcp.pop 32.0
        %v908 = vmul.f32 32.0, %v907
        %v909 = vsub.f32 1.0, %v908
        %v910 = vmul.f32 %v907, %v909
        %v911 = vadd.f32 %v907, %v910
        %vm912 = vweird.f32 %v907
        %v913 = vsel %vm912, %v907, %v911
        %v914 = vmul.f32 %v903, %v913
        %v915 = vmul.f32 %v906, %v913
        %v916 = vsub.f32 %v888, %v914
        %v917 = vsub.f32 %v889, %v915
        %v918 = vmul.f32 %v916, %v916
        %v919 = vmul.f32 %v917, %v917
        %v920 = vsel %vm900, %v918, 0.0
        %921 = vadd.xlane.f32.xlu0 %v920
        %v922 = vpop.xlane.xlu0 %921
        %v923 = vsel %vm900, %v919, 0.0
        %924 = vadd.xlane.f32.xlu0 %v923
        %v925 = vpop.xlane.xlu0 %924
        %v926 = vmul.f32 %v922, %v913
        %v927 = vmul.f32 %v925, %v913
        %v928 = vadd.f32 %v926, 1e-05
        %v929 = vadd.f32 %v927, 1e-05
        %v930 = vrsqrt.pop %v928
        %v931 = vmul.f32 %v930, %v928
        %v932 = vmul.f32 %v931, %v930
        %v933 = vmul.f32 0.5, %v932
        %v934 = vsub.f32 1.5, %v933
        %v935 = vmul.f32 %v930, %v934
        %vm936 = vweird.f32 %v928
        %vm937 = vweird.f32 %v930
        %vm938 = vmor %vm936, %vm937
        %v939 = vsel %vm938, %v930, %v935
        %v940 = vrsqrt.pop %v929
        %v941 = vmul.f32 %v940, %v929
        %v942 = vmul.f32 %v941, %v940
        %v943 = vmul.f32 0.5, %v942
        %v944 = vsub.f32 1.5, %v943
        %v945 = vmul.f32 %v940, %v944
        %vm946 = vweird.f32 %v929
        %vm947 = vweird.f32 %v940
        %vm948 = vmor %vm946, %vm947
        %v949 = vsel %vm948, %v940, %v945
        %v950 = vmul.f32 %v916, %v939
        %v951 = vmul.f32 %v917, %v949
        %v953 = vperm.slane %v898, 0
        %v955 = vmul.f32 %v950, %v953
        %v956 = vmul.f32 %v951, %v953
        %v958 = vperm.slane %v899, 0
        %v960 = vadd.f32 %v955, %v958
        %v961 = vadd.f32 %v956, %v958
        %v962 = vld [vmem:[%s830] sm:$0xf]
        %v963 = vld [vmem:[%s830 + $0x4] sm:$0xf]
        %v964 = vld [vmem:[%s830 + $0x8] sm:$0xf]
        %v965 = vld [vmem:[%s830 + $0xc] sm:$0xf]
        %v966 = vpack.c.bf16 %v961, %v960
        %v967 = vld [vmem:[%s833] sm:$0x1]
        %v969 = vperm.slane %v967, 0
        %v975 = vunpack.c.l.b16 %v962
        %v976 = vunpack.c.l.b16 %v963
        %v977 = vunpack.c.l.b16 %v964
        %v978 = vunpack.c.l.b16 %v965
        %v979 = vpack.c.b16 %v976, %v975
        %v980 = vpack.c.b16 %v978, %v977
        %v984 = vsel %vm900, %v966, 0
        %986 = vmatpush.bf16.msra.mxu0 0
        %987 = vmatpush.bf16.msra.mxu0 0
        %988 = vmatpush.bf16.msra.mxu0 0
        %989 = vmatpush.bf16.msra.mxu0 0
        %990 = vmatpush.bf16.msra.mxu0 0
        %991 = vmatpush.bf16.msra.mxu0 0
        %992 = vmatpush.bf16.msra.mxu0 %v980
        %993 = vmatpush.bf16.msra.mxu0 %v979
        %994 = vmatmul.bf16.gmra.mxu0 %v984
        %v995 = vpop.f32.mrf.mxu0
        %v996 = vadd.f32 %v969, %v995
        %v997 = vpop.f32.mrf.mxu0
        %v998 = vadd.f32 %v969, %v997
        %999 = vdwg.mxu0
        %v1000 = vld [vmem:[%s838] sm:$0xf]
        %v1001 = vld [vmem:[%s838 + $0x4] sm:$0xf]
        %v1002 = vld [vmem:[%s838 + $0x8] sm:$0xf]
        %v1003 = vld [vmem:[%s838 + $0xc] sm:$0xf]
        %v1008 = vunpack.c.l.b16 %v1000
        %v1009 = vunpack.c.l.b16 %v1001
        %v1010 = vunpack.c.l.b16 %v1002
        %v1011 = vunpack.c.l.b16 %v1003
        %v1012 = vpack.c.b16 %v1009, %v1008
        %v1013 = vpack.c.b16 %v1011, %v1010
        %1016 = vmatpush.bf16.msra.mxu0 0
        %1017 = vmatpush.bf16.msra.mxu0 0
        %1018 = vmatpush.bf16.msra.mxu0 0
        %1019 = vmatpush.bf16.msra.mxu0 0
        %1020 = vmatpush.bf16.msra.mxu0 0
        %1021 = vmatpush.bf16.msra.mxu0 0
        %1022 = vmatpush.bf16.msra.mxu0 %v1013
        %1023 = vmatpush.bf16.msra.mxu0 %v1012
        %1024 = vmatmul.bf16.gmra.mxu0 %v984
        %v1025 = vpop.f32.mrf.mxu0
        %v1026 = vadd.f32 0.0, %v1025
        %v1027 = vpop.f32.mrf.mxu0
        %v1028 = vadd.f32 0.0, %v1027
        %1029 = vdwg.mxu0
        %v1030 = vld [vmem:[%s843] sm:$0xf]
        %v1031 = vld [vmem:[%s843 + $0x4] sm:$0xf]
        %v1032 = vpack.c.bf16 %v1028, %v1026
        %v1035 = vunpack.c.l.b16 %v1030
        %v1036 = vunpack.c.l.b16 %v1031
        %v1037 = vpack.c.b16 %v1036, %v1035
        %vm1039 = vcmask 130048
        %v1041 = vsel %vm1039, %v1032, 0
        %1043 = vmatpush.bf16.msra.mxu0 0
        %1044 = vmatpush.bf16.msra.mxu0 0
        %1045 = vmatpush.bf16.msra.mxu0 0
        %1046 = vmatpush.bf16.msra.mxu0 0
        %1047 = vmatpush.bf16.msra.mxu0 0
        %1048 = vmatpush.bf16.msra.mxu0 0
        %1049 = vmatpush.bf16.msra.mxu0 0
        %1050 = vmatpush.bf16.msra.mxu0 %v1037
        %1051 = vmatmul.bf16.gmra.mxu0 %v1041
        %v1052 = vpop.f32.mrf.mxu0
        %v1053 = vadd.f32 0.0, %v1052
        %v1054 = vpop.f32.mrf.mxu0
        %v1055 = vadd.f32 0.0, %v1054
        %1056 = vdwg.mxu0
        %v1057 = vadd.f32 %v996, %v1053
        %v1058 = vadd.f32 %v998, %v1055
        %v1059 = vmul.f32 %v1057, 0.35355338
        %v1060 = vmul.f32 %v1058, 0.35355338
        %v1061 = vmul.f32 %v1059, %v894
        %v1062 = vmul.f32 %v1059, %v895
        %v1063 = vmul.f32 %v1059, %v896
        %v1064 = vmul.f32 %v1059, %v897
        %v1065 = vmul.f32 %v1060, %v894
        %v1066 = vmul.f32 %v1060, %v895
        %v1067 = vmul.f32 %v1060, %v896
        %v1068 = vmul.f32 %v1060, %v897
        %v1069 = vpack.c.bf16 %v1061, %v1061
        %v1070 = vpack.c.bf16 %v1062, %v1062
        %v1071 = vpack.c.bf16 %v1063, %v1063
        %v1072 = vpack.c.bf16 %v1064, %v1064
        %v1073 = vpack.c.bf16 %v1065, %v1065
        %v1074 = vpack.c.bf16 %v1066, %v1066
        %v1075 = vpack.c.bf16 %v1067, %v1067
        %v1076 = vpack.c.bf16 %v1068, %v1068
        %v1077 = vpack.c.bf16 %v1057, %v1057
        %v1078 = vpack.c.bf16 %v1058, %v1058
        %v1083 = vunpack.c.l.b16 %v1069
        %v1084 = vunpack.c.l.b16 %v1070
        %v1085 = vunpack.c.l.b16 %v1071
        %v1086 = vunpack.c.l.b16 %v1072
        %v1087 = vpack.c.b16 %v1084, %v1083
        %v1088 = vpack.c.b16 %v1086, %v1085
        %v1090 = vunpack.c.l.b16 %v1077
        %v1091 = vpack.c.b16 %v1090, %v1090
        %1092 = vrot.lane.b32.xlu0 %v1091, 96
        %v1093 = vpop.permute.xlu0 %1092
        %v1095 = vsel %vm900, %v1087, 0
        %v1098 = vsel %vm900, %v1088, 0
        %v1101 = vsel %vm900, %v1093, 0
        %1103 = vmatpush.bf16.xpose.msra.mxu0 0
        %1104 = vmatpush.bf16.xpose.msra.mxu0 0
        %1105 = vmatpush.bf16.xpose.msra.mxu0 0
        %1106 = vmatpush.bf16.xpose.msra.mxu0 0
        %1107 = vmatpush.bf16.xpose.msra.mxu0 0
        %1108 = vmatpush.bf16.xpose.msra.mxu0 0
        %1109 = vmatpush.bf16.xpose.msra.mxu0 0
        %1110 = vmatpush.bf16.xpose.msra.mxu0 %v1101
        %1111 = vmatmul.bf16.gmra.mxu0 %v1095
        %v1112 = vpop.f32.mrf.mxu0
        %v1113 = vadd.f32 %v890, %v1112
        %v1114 = vpop.f32.mrf.mxu0
        %v1115 = vadd.f32 %v891, %v1114
        %1116 = vmatmul.bf16.gmra.mxu0 %v1098
        %v1117 = vpop.f32.mrf.mxu0
        %v1118 = vadd.f32 %v892, %v1117
        %v1119 = vpop.f32.mrf.mxu0
        %v1120 = vadd.f32 %v893, %v1119
        %1121 = vdwg.mxu0
        %v1126 = vunpack.c.l.b16 %v1073
        %v1127 = vunpack.c.l.b16 %v1074
        %v1128 = vunpack.c.l.b16 %v1075
        %v1129 = vunpack.c.l.b16 %v1076
        %v1130 = vpack.c.b16 %v1127, %v1126
        %v1131 = vpack.c.b16 %v1129, %v1128
        %v1133 = vunpack.c.l.b16 %v1078
        %v1134 = vpack.c.b16 %v1133, %v1133
        %1135 = vrot.lane.b32.xlu0 %v1134, 96
        %v1136 = vpop.permute.xlu0 %1135
        %v1138 = vsel %vm900, %v1130, 0
        %v1141 = vsel %vm900, %v1131, 0
        %v1144 = vsel %vm900, %v1136, 0
        %1146 = vmatpush.bf16.xpose.msra.mxu0 0
        %1147 = vmatpush.bf16.xpose.msra.mxu0 0
        %1148 = vmatpush.bf16.xpose.msra.mxu0 0
        %1149 = vmatpush.bf16.xpose.msra.mxu0 0
        %1150 = vmatpush.bf16.xpose.msra.mxu0 0
        %1151 = vmatpush.bf16.xpose.msra.mxu0 0
        %1152 = vmatpush.bf16.xpose.msra.mxu0 0
        %1153 = vmatpush.bf16.xpose.msra.mxu0 %v1144
        %1154 = vmatmul.bf16.gmra.mxu0 %v1138
        %v1155 = vpop.f32.mrf.mxu0
        %v1156 = vadd.f32 %v890, %v1155
        %v1157 = vpop.f32.mrf.mxu0
        %v1158 = vadd.f32 %v891, %v1157
        %1159 = vmatmul.bf16.gmra.mxu0 %v1141
        %v1160 = vpop.f32.mrf.mxu0
        %v1161 = vadd.f32 %v892, %v1160
        %v1162 = vpop.f32.mrf.mxu0
        %v1163 = vadd.f32 %v893, %v1162
        %1164 = vdwg.mxu0
        %vm1165 = vcmask 64512
        %v1166 = vsel %vm1165, %v1113, -inf
        %1167 = vmax.xlane.f32.xlu0 %v1166
        %v1168 = vpop.xlane.xlu0 %1167
        %v1169 = vsel %vm1165, %v1115, -inf
        %1170 = vmax.xlane.f32.xlu0 %v1169
        %v1171 = vpop.xlane.xlu0 %1170
        %v1172 = vsel %vm1165, %v1118, -inf
        %1173 = vmax.xlane.f32.xlu0 %v1172
        %v1174 = vpop.xlane.xlu0 %1173
        %v1175 = vsel %vm1165, %v1120, -inf
        %1176 = vmax.xlane.f32.xlu0 %v1175
        %v1177 = vpop.xlane.xlu0 %1176
        %v1178 = vsel %vm1165, %v1156, -inf
        %1179 = vmax.xlane.f32.xlu0 %v1178
        %v1180 = vpop.xlane.xlu0 %1179
        %v1181 = vsel %vm1165, %v1158, -inf
        %1182 = vmax.xlane.f32.xlu0 %v1181
        %v1183 = vpop.xlane.xlu0 %1182
        %v1184 = vsel %vm1165, %v1161, -inf
        %1185 = vmax.xlane.f32.xlu0 %v1184
        %v1186 = vpop.xlane.xlu0 %1185
        %v1187 = vsel %vm1165, %v1163, -inf
        %1188 = vmax.xlane.f32.xlu0 %v1187
        %v1189 = vpop.xlane.xlu0 %1188
        %v1190 = vsub.f32 %v1113, %v1168
        %v1191 = vsub.f32 %v1115, %v1171
        %v1192 = vsub.f32 %v1118, %v1174
        %v1193 = vsub.f32 %v1120, %v1177
        %v1194 = vsub.f32 %v1156, %v1180
        %v1195 = vsub.f32 %v1158, %v1183
        %v1196 = vsub.f32 %v1161, %v1186
        %v1197 = vsub.f32 %v1163, %v1189
        %v1198 = vmul.f32 %v1190, 1.442695
        %v1199 = vpow.pop %v1198
        %v1200 = vmul.f32 %v1191, 1.442695
        %v1201 = vpow.pop %v1200
        %v1202 = vmul.f32 %v1192, 1.442695
        %v1203 = vpow.pop %v1202
        %v1204 = vmul.f32 %v1193, 1.442695
        %v1205 = vpow.pop %v1204
        %v1206 = vmul.f32 %v1194, 1.442695
        %v1207 = vpow.pop %v1206
        %v1208 = vmul.f32 %v1195, 1.442695
        %v1209 = vpow.pop %v1208
        %v1210 = vmul.f32 %v1196, 1.442695
        %v1211 = vpow.pop %v1210
        %v1212 = vmul.f32 %v1197, 1.442695
        %v1213 = vpow.pop %v1212
        %v1214 = vsel %vm1165, %v1199, 0.0
        %1215 = vadd.xlane.f32.xlu0 %v1214
        %v1216 = vpop.xlane.xlu0 %1215
        %v1217 = vsel %vm1165, %v1201, 0.0
        %1218 = vadd.xlane.f32.xlu0 %v1217
        %v1219 = vpop.xlane.xlu0 %1218
        %v1220 = vsel %vm1165, %v1203, 0.0
        %1221 = vadd.xlane.f32.xlu0 %v1220
        %v1222 = vpop.xlane.xlu0 %1221
        %v1223 = vsel %vm1165, %v1205, 0.0
        %1224 = vadd.xlane.f32.xlu0 %v1223
        %v1225 = vpop.xlane.xlu0 %1224
        %v1226 = vsel %vm1165, %v1207, 0.0
        %1227 = vadd.xlane.f32.xlu0 %v1226
        %v1228 = vpop.xlane.xlu0 %1227
        %v1229 = vsel %vm1165, %v1209, 0.0
        %1230 = vadd.xlane.f32.xlu0 %v1229
        %v1231 = vpop.xlane.xlu0 %1230
        %v1232 = vsel %vm1165, %v1211, 0.0
        %1233 = vadd.xlane.f32.xlu0 %v1232
        %v1234 = vpop.xlane.xlu0 %1233
        %v1235 = vsel %vm1165, %v1213, 0.0
        %1236 = vadd.xlane.f32.xlu0 %v1235
        %v1237 = vpop.xlane.xlu0 %1236
        %v1238 = vrcp.pop %v1216
        %v1239 = vrcp.pop %v1219
        %v1240 = vrcp.pop %v1222
        %v1241 = vrcp.pop %v1225
        %v1242 = vrcp.pop %v1228
        %v1243 = vrcp.pop %v1231
        %v1244 = vrcp.pop %v1234
        %v1245 = vrcp.pop %v1237
        %v1246 = vmul.f32 %v1199, %v1238
        %v1247 = vmul.f32 %v1201, %v1239
        %v1248 = vmul.f32 %v1203, %v1240
        %v1249 = vmul.f32 %v1205, %v1241
        %v1250 = vmul.f32 %v1207, %v1242
        %v1251 = vmul.f32 %v1209, %v1243
        %v1252 = vmul.f32 %v1211, %v1244
        %v1253 = vmul.f32 %v1213, %v1245
        %v1254 = vpack.c.bf16 %v1246, %v1246
        %v1255 = vpack.c.bf16 %v1247, %v1247
        %v1256 = vpack.c.bf16 %v1248, %v1248
        %v1257 = vpack.c.bf16 %v1249, %v1249
        %v1258 = vpack.c.bf16 %v1250, %v1250
        %v1259 = vpack.c.bf16 %v1251, %v1251
        %v1260 = vpack.c.bf16 %v1252, %v1252
        %v1261 = vpack.c.bf16 %v1253, %v1253
        %v1266 = vunpack.c.l.b16 %v1254
        %v1267 = vunpack.c.l.b16 %v1255
        %v1268 = vunpack.c.l.b16 %v1256
        %v1269 = vunpack.c.l.b16 %v1257
        %v1270 = vpack.c.b16 %v1267, %v1266
        %v1271 = vpack.c.b16 %v1269, %v1268
        %1272 = vrot.lane.b32.xlu0 %v1091, 64
        %v1273 = vpop.permute.xlu0 %1272
        %v1275 = vsel %vm1165, %v1270, 0
        %v1278 = vsel %vm1165, %v1271, 0
        %vm1280 = vcmask 1043456
        %v1282 = vsel %vm1280, %v1273, 0
        %1284 = vmatpush.bf16.msra.mxu0 0
        %1285 = vmatpush.bf16.msra.mxu0 0
        %1286 = vmatpush.bf16.msra.mxu0 0
        %1287 = vmatpush.bf16.msra.mxu0 0
        %1288 = vmatpush.bf16.msra.mxu0 0
        %1289 = vmatpush.bf16.msra.mxu0 0
        %1290 = vmatpush.bf16.msra.mxu0 0
        %1291 = vmatpush.bf16.msra.mxu0 %v1282
        %1292 = vmatmul.bf16.gmra.mxu0 %v1275
        %v1293 = vpop.f32.mrf.mxu0
        %v1294 = vadd.f32 0.0, %v1293
        %v1295 = vpop.f32.mrf.mxu0
        %v1296 = vadd.f32 0.0, %v1295
        %1297 = vmatmul.bf16.gmra.mxu0 %v1278
        %v1298 = vpop.f32.mrf.mxu0
        %v1299 = vadd.f32 0.0, %v1298
        %v1300 = vpop.f32.mrf.mxu0
        %v1301 = vadd.f32 0.0, %v1300
        %1302 = vdwg.mxu0
        %v1307 = vunpack.c.l.b16 %v1258
        %v1308 = vunpack.c.l.b16 %v1259
        %v1309 = vunpack.c.l.b16 %v1260
        %v1310 = vunpack.c.l.b16 %v1261
        %v1311 = vpack.c.b16 %v1308, %v1307
        %v1312 = vpack.c.b16 %v1310, %v1309
        %1313 = vrot.lane.b32.xlu0 %v1134, 64
        %v1314 = vpop.permute.xlu0 %1313
        %v1316 = vsel %vm1165, %v1311, 0
        %v1319 = vsel %vm1165, %v1312, 0
        %v1322 = vsel %vm1280, %v1314, 0
        %1324 = vmatpush.bf16.msra.mxu0 0
        %1325 = vmatpush.bf16.msra.mxu0 0
        %1326 = vmatpush.bf16.msra.mxu0 0
        %1327 = vmatpush.bf16.msra.mxu0 0
        %1328 = vmatpush.bf16.msra.mxu0 0
        %1329 = vmatpush.bf16.msra.mxu0 0
        %1330 = vmatpush.bf16.msra.mxu0 0
        %1331 = vmatpush.bf16.msra.mxu0 %v1322
        %1332 = vmatmul.bf16.gmra.mxu0 %v1316
        %v1333 = vpop.f32.mrf.mxu0
        %v1334 = vadd.f32 0.0, %v1333
        %v1335 = vpop.f32.mrf.mxu0
        %v1336 = vadd.f32 0.0, %v1335
        %1337 = vmatmul.bf16.gmra.mxu0 %v1319
        %v1338 = vpop.f32.mrf.mxu0
        %v1339 = vadd.f32 0.0, %v1338
        %v1340 = vpop.f32.mrf.mxu0
        %v1341 = vadd.f32 0.0, %v1340
        %1342 = vdwg.mxu0
        %v1343 = vmul.f32 %v1294, %v894
        %v1344 = vmul.f32 %v1296, %v895
        %v1345 = vmul.f32 %v1299, %v896
        %v1346 = vmul.f32 %v1301, %v897
        %v1347 = vmul.f32 %v1334, %v894
        %v1348 = vmul.f32 %v1336, %v895
        %v1349 = vmul.f32 %v1339, %v896
        %v1350 = vmul.f32 %v1341, %v897
        %v1351 = vsel %vm900, %v1343, 0.0
        %v1352 = vsel %vm900, %v1344, 0.0
        %v1353 = vadd.f32 %v1351, %v1352
        %v1354 = vsel %vm900, %v1345, 0.0
        %v1355 = vadd.f32 %v1353, %v1354
        %v1356 = vsel %vm900, %v1346, 0.0
        %v1357 = vadd.f32 %v1355, %v1356
        %v1358 = vsel %vm900, %v1347, 0.0
        %v1359 = vsel %vm900, %v1348, 0.0
        %v1360 = vadd.f32 %v1358, %v1359
        %v1361 = vsel %vm900, %v1349, 0.0
        %v1362 = vadd.f32 %v1360, %v1361
        %v1363 = vsel %vm900, %v1350, 0.0
        %v1364 = vadd.f32 %v1362, %v1363
        %v1365 = vld [vmem:[%s848] sm:$0xf]
        %v1366 = vld [vmem:[%s848 + $0x4] sm:$0xf]
        %v1367 = vld [vmem:[%s848 + $0x8] sm:$0xf]
        %v1368 = vld [vmem:[%s848 + $0xc] sm:$0xf]
        %v1369 = vpack.c.bf16 %v1364, %v1357
        %v1374 = vunpack.c.l.b16 %v1365
        %v1375 = vunpack.c.l.b16 %v1366
        %v1376 = vunpack.c.l.b16 %v1367
        %v1377 = vunpack.c.l.b16 %v1368
        %v1378 = vpack.c.b16 %v1375, %v1374
        %v1379 = vpack.c.b16 %v1377, %v1376
        %v1383 = vsel %vm900, %v1369, 0
        %1385 = vmatpush.bf16.msra.mxu0 0
        %1386 = vmatpush.bf16.msra.mxu0 0
        %1387 = vmatpush.bf16.msra.mxu0 0
        %1388 = vmatpush.bf16.msra.mxu0 0
        %1389 = vmatpush.bf16.msra.mxu0 0
        %1390 = vmatpush.bf16.msra.mxu0 0
        %1391 = vmatpush.bf16.msra.mxu0 %v1379
        %1392 = vmatpush.bf16.msra.mxu0 %v1378
        %1393 = vmatmul.bf16.gmra.mxu0 %v1383
        %v1394 = vpop.f32.mrf.mxu0
        %v1395 = vadd.f32 0.0, %v1394
        %v1396 = vpop.f32.mrf.mxu0
        %v1397 = vadd.f32 0.0, %v1396
        %1398 = vdwg.mxu0
        %v1399 = vadd.f32 %v888, %v1395
        %v1400 = vadd.f32 %v889, %v1397
        %v1401 = vld [vmem:[%s851] sm:$0x1]
        %v1403 = vperm.slane %v1401, 0
        %v1405 = vadd.f32 %v1399, %v1403
        %v1406 = vadd.f32 %v1400, %v1403
        %v1407 = vld [vmem:[%s854] sm:$0x1]
        %v1408 = vld [vmem:[%s857] sm:$0x1]
        %v1409 = vsel %vm900, %v1405, 0.0
        %1410 = vadd.xlane.f32.xlu0 %v1409
        %v1411 = vpop.xlane.xlu0 %1410
        %v1412 = vsel %vm900, %v1406, 0.0
        %1413 = vadd.xlane.f32.xlu0 %v1412
        %v1414 = vpop.xlane.xlu0 %1413
        %v1415 = vmul.f32 %v1411, %v913
        %v1416 = vmul.f32 %v1414, %v913
        %v1417 = vsub.f32 %v1405, %v1415
        %v1418 = vsub.f32 %v1406, %v1416
        %v1419 = vmul.f32 %v1417, %v1417
        %v1420 = vmul.f32 %v1418, %v1418
        %v1421 = vsel %vm900, %v1419, 0.0
        %1422 = vadd.xlane.f32.xlu0 %v1421
        %v1423 = vpop.xlane.xlu0 %1422
        %v1424 = vsel %vm900, %v1420, 0.0
        %1425 = vadd.xlane.f32.xlu0 %v1424
        %v1426 = vpop.xlane.xlu0 %1425
        %v1427 = vmul.f32 %v1423, %v913
        %v1428 = vmul.f32 %v1426, %v913
        %v1429 = vadd.f32 %v1427, 1e-05
        %v1430 = vadd.f32 %v1428, 1e-05
        %v1431 = vrsqrt.pop %v1429
        %v1432 = vmul.f32 %v1431, %v1429
        %v1433 = vmul.f32 %v1432, %v1431
        %v1434 = vmul.f32 0.5, %v1433
        %v1435 = vsub.f32 1.5, %v1434
        %v1436 = vmul.f32 %v1431, %v1435
        %vm1437 = vweird.f32 %v1429
        %vm1438 = vweird.f32 %v1431
        %vm1439 = vmor %vm1437, %vm1438
        %v1440 = vsel %vm1439, %v1431, %v1436
        %v1441 = vrsqrt.pop %v1430
        %v1442 = vmul.f32 %v1441, %v1430
        %v1443 = vmul.f32 %v1442, %v1441
        %v1444 = vmul.f32 0.5, %v1443
        %v1445 = vsub.f32 1.5, %v1444
        %v1446 = vmul.f32 %v1441, %v1445
        %vm1447 = vweird.f32 %v1430
        %vm1448 = vweird.f32 %v1441
        %vm1449 = vmor %vm1447, %vm1448
        %v1450 = vsel %vm1449, %v1441, %v1446
        %v1451 = vmul.f32 %v1417, %v1440
        %v1452 = vmul.f32 %v1418, %v1450
        %v1454 = vperm.slane %v1407, 0
        %v1456 = vmul.f32 %v1451, %v1454
        %v1457 = vmul.f32 %v1452, %v1454
        %v1459 = vperm.slane %v1408, 0
        %v1461 = vadd.f32 %v1456, %v1459
        %v1462 = vadd.f32 %v1457, %v1459
        %v1463 = vld [vmem:[%s862] sm:$0xf]
        %v1464 = vld [vmem:[%s862 + $0x4] sm:$0xf]
        %v1465 = vld [vmem:[%s862 + $0x8] sm:$0xf]
        %v1466 = vld [vmem:[%s862 + $0xc] sm:$0xf]
        %v1467 = vpack.c.bf16 %v1462, %v1461
        %v1468 = vld [vmem:[%s865] sm:$0x1]
        %v1470 = vperm.slane %v1468, 0
        %v1476 = vunpack.c.l.b16 %v1463
        %v1477 = vunpack.c.l.b16 %v1464
        %v1478 = vunpack.c.l.b16 %v1465
        %v1479 = vunpack.c.l.b16 %v1466
        %v1480 = vpack.c.b16 %v1477, %v1476
        %v1481 = vpack.c.b16 %v1479, %v1478
        %v1485 = vsel %vm900, %v1467, 0
        %1487 = vmatpush.bf16.msra.mxu0 0
        %1488 = vmatpush.bf16.msra.mxu0 0
        %1489 = vmatpush.bf16.msra.mxu0 0
        %1490 = vmatpush.bf16.msra.mxu0 0
        %1491 = vmatpush.bf16.msra.mxu0 0
        %1492 = vmatpush.bf16.msra.mxu0 0
        %1493 = vmatpush.bf16.msra.mxu0 %v1481
        %1494 = vmatpush.bf16.msra.mxu0 %v1480
        %1495 = vmatmul.bf16.gmra.mxu0 %v1485
        %v1496 = vpop.f32.mrf.mxu0
        %v1497 = vadd.f32 %v1470, %v1496
        %v1498 = vpop.f32.mrf.mxu0
        %v1499 = vadd.f32 %v1470, %v1498
        %1500 = vdwg.mxu0
        %v1501 = vmul.f32 %v1497, 0.5
        %v1502 = vmul.f32 %v1499, 0.5
        %v1503 = vmul.f32 %v1497, 0.044715
        %v1504 = vmul.f32 %v1499, 0.044715
        %v1505 = vmul.f32 %v1503, %v1497
        %v1506 = vmul.f32 %v1504, %v1499
        %v1507 = vmul.f32 %v1505, %v1497
        %v1508 = vmul.f32 %v1506, %v1499
        %v1509 = vadd.f32 %v1497, %v1507
        %v1510 = vadd.f32 %v1499, %v1508
        %v1511 = vmul.f32 %v1509, 0.7978845
        %v1512 = vmul.f32 %v1510, 0.7978845
        %v1513 = vtanh.pop %v1511
        %v1514 = vtanh.pop %v1512
        %v1515 = vadd.f32 %v1513, 1.0
        %v1516 = vadd.f32 %v1514, 1.0
        %v1517 = vmul.f32 %v1501, %v1515
        %v1518 = vmul.f32 %v1502, %v1516
        %v1519 = vld [vmem:[%s870] sm:$0xf]
        %v1520 = vld [vmem:[%s870 + $0x4] sm:$0xf]
        %v1521 = vld [vmem:[%s870 + $0x8] sm:$0xf]
        %v1522 = vld [vmem:[%s870 + $0xc] sm:$0xf]
        %v1523 = vld [vmem:[%s870 + $0x10] sm:$0xf]
        %v1524 = vld [vmem:[%s870 + $0x14] sm:$0xf]
        %v1525 = vld [vmem:[%s870 + $0x18] sm:$0xf]
        %v1526 = vld [vmem:[%s870 + $0x1c] sm:$0xf]
        %v1527 = vld [vmem:[%s870 + $0x20] sm:$0xf]
        %v1528 = vld [vmem:[%s870 + $0x24] sm:$0xf]
        %v1529 = vld [vmem:[%s870 + $0x28] sm:$0xf]
        %v1530 = vld [vmem:[%s870 + $0x2c] sm:$0xf]
        %v1531 = vld [vmem:[%s870 + $0x30] sm:$0xf]
        %v1532 = vld [vmem:[%s870 + $0x34] sm:$0xf]
        %v1533 = vld [vmem:[%s870 + $0x38] sm:$0xf]
        %v1534 = vld [vmem:[%s870 + $0x3c] sm:$0xf]
        %v1535 = vpack.c.bf16 %v1518, %v1517
        %v1552 = vunpack.c.l.b16 %v1519
        %v1553 = vunpack.c.l.b16 %v1520
        %v1554 = vunpack.c.l.b16 %v1521
        %v1555 = vunpack.c.l.b16 %v1522
        %v1556 = vunpack.c.l.b16 %v1523
        %v1557 = vunpack.c.l.b16 %v1524
        %v1558 = vunpack.c.l.b16 %v1525
        %v1559 = vunpack.c.l.b16 %v1526
        %v1560 = vunpack.c.l.b16 %v1527
        %v1561 = vunpack.c.l.b16 %v1528
        %v1562 = vunpack.c.l.b16 %v1529
        %v1563 = vunpack.c.l.b16 %v1530
        %v1564 = vunpack.c.l.b16 %v1531
        %v1565 = vunpack.c.l.b16 %v1532
        %v1566 = vunpack.c.l.b16 %v1533
        %v1567 = vunpack.c.l.b16 %v1534
        %v1568 = vpack.c.b16 %v1553, %v1552
        %v1569 = vpack.c.b16 %v1555, %v1554
        %v1570 = vpack.c.b16 %v1557, %v1556
        %v1571 = vpack.c.b16 %v1559, %v1558
        %v1572 = vpack.c.b16 %v1561, %v1560
        %v1573 = vpack.c.b16 %v1563, %v1562
        %v1574 = vpack.c.b16 %v1565, %v1564
        %v1575 = vpack.c.b16 %v1567, %v1566
        %1584 = vmatpush.bf16.msra.mxu0 %v1575
        %1585 = vmatpush.bf16.msra.mxu0 %v1574
        %1586 = vmatpush.bf16.msra.mxu0 %v1573
        %1587 = vmatpush.bf16.msra.mxu0 %v1572
        %1588 = vmatpush.bf16.msra.mxu0 %v1571
        %1589 = vmatpush.bf16.msra.mxu0 %v1570
        %1590 = vmatpush.bf16.msra.mxu0 %v1569
        %1591 = vmatpush.bf16.msra.mxu0 %v1568
        %1592 = vmatmul.bf16.gmra.mxu0 %v1535
        %v1593 = vpop.f32.mrf.mxu0
        %v1594 = vadd.f32 0.0, %v1593
        %v1595 = vpop.f32.mrf.mxu0
        %v1596 = vadd.f32 0.0, %v1595
        %1597 = vdwg.mxu0
        %v1598 = vadd.f32 %v1405, %v1594
        %v1599 = vadd.f32 %v1406, %v1596
        %v1600 = vld [vmem:[%s873] sm:$0x1]
        %v1602 = vperm.slane %v1600, 0
        %v1604 = vadd.f32 %v1598, %v1602
        %v1605 = vadd.f32 %v1599, %v1602
        %1606 = vst.msk [vmem:[#allocation2] sm:$0xff] %vm900, %v1604
        %1607 = vst.msk [vmem:[#allocation2 + $0x8] sm:$0xff] %vm900, %v1605
        %p1608 = scmp.eq.s32.totalorder %s39, 1
        // Predicated region
        $region105: #{pfa_forward.1} parent=99 // pred_check
          %p1609 = pneg %p1608
        $region106: #{pfa_forward.1} parent=99 // pred_check_branch
          %1611 = sbr.rel (%p1609) target = $region108
        $region107: #{pfa_forward.1} parent=99 // pred_region
          %v1612 = vld [vmem:[%s18] sm:$0x1]
          %v1613 = vld [vmem:[%s19] sm:$0x1]
          %v1614 = vsel %vm900, %v1604, 0.0
          %1615 = vadd.xlane.f32.xlu0 %v1614
          %v1616 = vpop.xlane.xlu0 %1615
          %v1617 = vsel %vm900, %v1605, 0.0
          %1618 = vadd.xlane.f32.xlu0 %v1617
          %v1619 = vpop.xlane.xlu0 %1618
          %v1620 = vmul.f32 %v1616, %v913
          %v1621 = vmul.f32 %v1619, %v913
          %v1622 = vsub.f32 %v1604, %v1620
          %v1623 = vsub.f32 %v1605, %v1621
          %v1624 = vmul.f32 %v1622, %v1622
          %v1625 = vmul.f32 %v1623, %v1623
          %v1626 = vsel %vm900, %v1624, 0.0
          %1627 = vadd.xlane.f32.xlu0 %v1626
          %v1628 = vpop.xlane.xlu0 %1627
          %v1629 = vsel %vm900, %v1625, 0.0
          %1630 = vadd.xlane.f32.xlu0 %v1629
          %v1631 = vpop.xlane.xlu0 %1630
          %v1632 = vmul.f32 %v1628, %v913
          %v1633 = vmul.f32 %v1631, %v913
          %v1634 = vadd.f32 %v1632, 1e-05
          %v1635 = vadd.f32 %v1633, 1e-05
          %v1636 = vrsqrt.pop %v1634
          %v1637 = vmul.f32 %v1636, %v1634
          %v1638 = vmul.f32 %v1637, %v1636
          %v1639 = vmul.f32 0.5, %v1638
          %v1640 = vsub.f32 1.5, %v1639
          %v1641 = vmul.f32 %v1636, %v1640
          %vm1642 = vweird.f32 %v1634
          %vm1643 = vweird.f32 %v1636
          %vm1644 = vmor %vm1642, %vm1643
          %v1645 = vsel %vm1644, %v1636, %v1641
          %v1646 = vrsqrt.pop %v1635
          %v1647 = vmul.f32 %v1646, %v1635
          %v1648 = vmul.f32 %v1647, %v1646
          %v1649 = vmul.f32 0.5, %v1648
          %v1650 = vsub.f32 1.5, %v1649
          %v1651 = vmul.f32 %v1646, %v1650
          %vm1652 = vweird.f32 %v1635
          %vm1653 = vweird.f32 %v1646
          %vm1654 = vmor %vm1652, %vm1653
          %v1655 = vsel %vm1654, %v1646, %v1651
          %v1656 = vmul.f32 %v1622, %v1645
          %v1657 = vmul.f32 %v1623, %v1655
          %v1659 = vperm.slane %v1612, 0
          %v1661 = vmul.f32 %v1656, %v1659
          %v1662 = vmul.f32 %v1657, %v1659
          %v1664 = vperm.slane %v1613, 0
          %v1666 = vadd.f32 %v1661, %v1664
          %v1667 = vadd.f32 %v1662, %v1664
          %1668 = vst.msk [vmem:[%s813] sm:$0xff] %vm900, %v1666
          %1669 = vst.msk [vmem:[%s813 + $0x8] sm:$0xff] %vm900, %v1667
        $region108: #{pfa_forward.1} parent=99 // pred_fallthru
          _
        %s1670 = sand.u32 %s549, 1
        %s1671 = scalar_lea.sflag [#allocation4], %s1670
        %s1672 = sand.u32 %s549, 1
        %s1673 = smul.addr %s1672, 16
        %s1674 = scalar_lea.vmem [#allocation3], %s1673
        // Predicated region
        $region109: #{pfa_forward.1} parent=99 // pred_check
          %p1675 = pneg %p559
        $region110: #{pfa_forward.1} parent=99 // pred_check_branch
          %1677 = sbr.rel (%p1675) target = $region112
        $region111: #{pfa_forward.1} parent=99 // pred_region
          %s1678 = smul.u32 2, %s38
          %1680 = vsyncadd %s1671, 0
          %s1681 = smul.addr %s1678, 8
          %s1682 = scalar_lea.hbm %s20, %s1681
          %s1683 = sshll.u32 %s1674, 4
          %s1684 = int_to_ptr.vmem [resolvable:$true] %s1683
          %s1685 = sshll.u32 %s1682, 4
          %s1686 = int_to_ptr.hbm [resolvable:$true] %s1685
          %1691 = dma.vmem_to_hbm [thread:$0]  %s1684, 256, %s1686, %s1671, 128, 128, 8
        $region112: #{pfa_forward.1} parent=99 // pred_fallthru
          _
      $region100: #{pfa_forward.1} parent=5 // pred_fallthru
        _
      %p1692 = scmp.le.s32.totalorder 2, %s29
      // Predicated region
      $region113: #{pfa_forward.1} parent=5 // pred_check
        %p1693 = pneg %p1692
      $region114: #{pfa_forward.1} parent=5 // pred_check_branch
        %1695 = sbr.rel (%p1693) target = $region116
      $region115: #{pfa_forward.1} parent=5 // pred_region
        %s1696 = ssub.s32 %s29, 2
        // Predicated region
        $region117: #{pfa_forward.1} parent=115 // pred_check
          %p1697 = pneg %p565
        $region118: #{pfa_forward.1} parent=115 // pred_check_branch
          %1699 = sbr.rel (%p1697) target = $region120
        $region119: #{pfa_forward.1} parent=115 // pred_region
          %s1700 = sand.u32 %s550, 1
          %s1701 = scalar_lea.sflag [#allocation4], %s1700
          %s1702 = sand.u32 %s550, 1
          %s1703 = smul.addr %s1702, 16
          %s1704 = scalar_lea.vmem [#allocation3], %s1703
          %1706 = dma.done %s1701, 256
        $region120: #{pfa_forward.1} parent=115 // pred_fallthru
          _
      $region116: #{pfa_forward.1} parent=5 // pred_fallthru
        _
    $region6: #{pfa_forward.1} parent=1 // loop_footer
      %s33 = sadd.s32 1, %s29
    $region7: #{pfa_forward.1} parent=1 // loop_footer_branch
      %28 = sbr.rel target = $region3
    $region8: #{pfa_forward.1} parent=1 // loop_exit
      _
    %1707 = vsyncpa [#allocation4], 1
    %s1708 = scalar_lea.sflag [#allocation4], 1
    %1709 = vsyncpa %s1708, 1

</llo_original>
